<compile_context>
chip_gen: v7x
topology: tpu7x:2x2x1
jax: 0.10.0
libtpu: 0.0.40
codegen_flags: <defaults>
</compile_context>

<pallas_src>
import functools
import math

import jax
import jax.numpy as jnp
from jax.experimental import pallas as pl
from jax.experimental.pallas import tpu as pltpu


def _layer_norm(v, g, b, eps=1e-5):
    mu = jnp.mean(v, axis=-1, keepdims=True)
    var = jnp.mean((v - mu) ** 2, axis=-1, keepdims=True)
    return (v - mu) * jax.lax.rsqrt(var + eps) * g + b


def _gelu_tanh(x):
    # tanh-form GELU: the tanh runs on the EUP slot instead of a ~12-op VALU
    # polynomial; max abs deviation from the exact-erf nn.GELU() is ~3e-4.
    c = math.sqrt(2.0 / math.pi)
    return 0.5 * x * (1.0 + jnp.tanh(c * (x + 0.044715 * (x * x * x))))


def transformer_block_kernel(x_ref, mask_ref,
                             wqkv_ref, wo_ref,
                             w1_ref, b1_ref, w2_ref, b2_ref,
                             ln1g_ref, ln1b_ref, ln2g_ref, ln2b_ref,
                             out_ref, attn_cat_ref,
                             *, num_heads, d_k, ff_chunk):
    H = num_heads * d_k
    d_ff = w1_ref.shape[1]

    x = x_ref[0]                                   # (S, H) f32
    maskf = mask_ref[0].astype(jnp.float32)        # (S, S)
    mask0 = maskf == 0.0
    neg_bias = jnp.where(mask0, -1e9, 0.0)         # additive mask, hoisted (one select)

    # ---- sublayer 1: x + MultiHeadedAttention(LayerNorm(x)) ----
    h1 = _layer_norm(x, ln1g_ref[...], ln1b_ref[...])

    # Fused Q|K|V projection: one wide MXU matmul, bf16 operands, f32 accumulation.
    qkv = jnp.dot(h1.astype(jnp.bfloat16), wqkv_ref[...],
                  preferred_element_type=jnp.float32)          # (S, 3H) f32
    scale = 1.0 / math.sqrt(d_k)
    qb = (qkv[:, 0:H] * scale).astype(jnp.bfloat16)            # (S, H) pre-scaled
    ktb = qkv[:, H:2 * H].T.astype(jnp.bfloat16)               # (H, S) hoisted transpose
    vb = qkv[:, 2 * H:3 * H].astype(jnp.bfloat16)              # (S, H)

    for hh in range(num_heads):                    # static, small, unrolled head loop
        lo = hh * d_k
        qs = qb[:, lo:lo + d_k]                    # (S, d_k)
        kts = ktb[lo:lo + d_k, :]                  # (d_k, S)
        vs = vb[:, lo:lo + d_k]                    # (S, d_k)
        scores = jnp.dot(qs, kts, preferred_element_type=jnp.float32) + neg_bias
        m = jnp.max(scores, axis=-1, keepdims=True)
        e = jnp.exp(scores - m)
        p = e * pl.reciprocal(jnp.sum(e, axis=-1, keepdims=True), approx=True)
        p = jnp.where(mask0, 0.0, p)               # exact PyTorch masked_fill(p, 0)
        out_h = jnp.dot(p.astype(jnp.bfloat16), vs,
                        preferred_element_type=jnp.float32)    # (S, d_k)
        attn_cat_ref[:, lo:lo + d_k] = out_h       # concat buffer in VMEM scratch

    # Single K=H matmul with W_o instead of num_heads small-K matmuls.
    attn_out = jnp.dot(attn_cat_ref[...].astype(jnp.bfloat16), wo_ref[...],
                       preferred_element_type=jnp.float32)
    x1 = x + attn_out

    # ---- sublayer 2: x1 + PositionwiseFeedForward(LayerNorm(x1)) ----
    h2b = _layer_norm(x1, ln2g_ref[...], ln2b_ref[...]).astype(jnp.bfloat16)
    ffn = jnp.broadcast_to(b2_ref[...], x.shape)   # start from bias, hoisted
    for c0 in range(0, d_ff, ff_chunk):            # d_ff tiled: bounds (S, d_ff) live set
        c1 = min(c0 + ff_chunk, d_ff)
        hid = (jnp.dot(h2b, w1_ref[:, c0:c1], preferred_element_type=jnp.float32)
               + b1_ref[:, c0:c1])
        hid = _gelu_tanh(hid)
        ffn = ffn + jnp.dot(hid.astype(jnp.bfloat16), w2_ref[c0:c1, :],
                            preferred_element_type=jnp.float32)

    # x[~(mask.sum(-1) > 0)] = 0 — zero fully-masked rows of the FFN output only.
    row_valid = jnp.sum(maskf, axis=-1, keepdims=True) > 0.0   # (S, 1)
    ffn = jnp.where(row_valid, ffn, 0.0)

    out_ref[0] = x1 + ffn


def transformer_block(x, mask, params, *, num_heads, ff_chunk=512):
    B, S, H = x.shape
    d_k = H // num_heads
    d_ff = params["w1"].shape[1]
    ff_chunk = min(ff_chunk, d_ff)

    # Fuse Q|K|V weights and ship all matmul weights as bf16 (halves weight DMA /
    # VMEM; MXU runs bf16-native; accumulation stays f32 inside the kernel).
    wqkv = jnp.concatenate(
        [params["wq"], params["wk"], params["wv"]], axis=1).astype(jnp.bfloat16)
    wo = params["wo"].astype(jnp.bfloat16)
    w1 = params["w1"].astype(jnp.bfloat16)
    w2 = params["w2"].astype(jnp.bfloat16)

    kern = functools.partial(transformer_block_kernel,
                             num_heads=num_heads, d_k=d_k, ff_chunk=ff_chunk)

    def full(shp):
        n = len(shp)
        return pl.BlockSpec(shp, lambda b, _n=n: (0,) * _n)

    # TODO(synk): single-buffer the grid-invariant weight specs
    #   (pipeline_mode=pl.Buffered(1)) to halve weight VMEM on v7x (64 MiB).
    # TODO(synk): for long sequences, tile S flash-style (grid (B, S//tq), online
    #   softmax over K tiles) and replace the dense (B,S,S) mask with per-row valid
    #   lengths via PrefetchScalarGridSpec scalar prefetch; also pad H to a multiple
    #   of 128 (with LN masking) for lane-dense stores.
    return pl.pallas_call(
        kern,
        out_shape=jax.ShapeDtypeStruct((B, S, H), jnp.float32),
        grid=(B,),
        in_specs=[
            pl.BlockSpec((1, S, H), lambda b: (b, 0, 0)),   # x
            pl.BlockSpec((1, S, S), lambda b: (b, 0, 0)),   # mask
            full((H, 3 * H)), full((H, H)),                 # wqkv, wo
            full((H, d_ff)), full((1, d_ff)),               # w1, b1
            full((d_ff, H)), full((1, H)),                  # w2, b2
            full((1, H)), full((1, H)), full((1, H)), full((1, H)),  # ln params
        ],
        out_specs=pl.BlockSpec((1, S, H), lambda b: (b, 0, 0)),
        scratch_shapes=[pltpu.VMEM((S, H), jnp.float32)],   # per-head concat buffer
        compiler_params=pltpu.CompilerParams(
            dimension_semantics=("parallel",),
            vmem_limit_bytes=64 * 1024 * 1024),
    )(x, mask, wqkv, wo, w1, params["b1"], w2, params["b2"],
      params["ln1_g"], params["ln1_b"], params["ln2_g"], params["ln2_b"])


def reference(x, mask, params, *, num_heads):
    """Pure-JAX replica of the PyTorch forward (eval mode) for verification."""
    B, S, H = x.shape
    d_k = H // num_heads

    def ln(v, g, b):
        mu = v.mean(-1, keepdims=True)
        var = ((v - mu) ** 2).mean(-1, keepdims=True)
        return (v - mu) / jnp.sqrt(var + 1e-5) * g + b

    h1 = ln(x, params["ln1_g"][0], params["ln1_b"][0])
    q = h1 @ params["wq"]
    k = h1 @ params["wk"]
    v = h1 @ params["wv"]

    def split(t):
        return t.reshape(B, S, num_heads, d_k).transpose(0, 2, 1, 3)

    q, k, v = split(q), split(k), split(v)
    scores = jnp.einsum("bhqd,bhkd->bhqk", q, k) / math.sqrt(d_k)
    m0 = mask[:, None, :, :] == 0
    scores = jnp.where(m0, -1e9, scores)
    p = jax.nn.softmax(scores, axis=-1)
    p = jnp.where(m0, 0.0, p)
    o = jnp.einsum("bhqk,bhkd->bhqd", p, v).transpose(0, 2, 1, 3).reshape(B, S, H)
    x1 = x + o @ params["wo"]

    h2 = ln(x1, params["ln2_g"][0], params["ln2_b"][0])
    hid = h2 @ params["w1"] + params["b1"][0]
    hid = 0.5 * hid * (1.0 + jax.scipy.special.erf(hid / math.sqrt(2.0)))
    ffn = hid @ params["w2"] + params["b2"][0]
    row_valid = mask.sum(-1, keepdims=True) > 0
    ffn = jnp.where(row_valid, ffn, 0.0)
    return x1 + ffn


if __name__ == "__main__":
    B, S, H, NH = 2, 8, 32, 4
    D_FF = 4 * H

    key = jax.random.PRNGKey(0)
    ks = jax.random.split(key, 14)
    sc = 0.05
    params = {
        "wq": sc * jax.random.normal(ks[0], (H, H), jnp.float32),
        "wk": sc * jax.random.normal(ks[1], (H, H), jnp.float32),
        "wv": sc * jax.random.normal(ks[2], (H, H), jnp.float32),
        "wo": sc * jax.random.normal(ks[3], (H, H), jnp.float32),
        "w1": sc * jax.random.normal(ks[4], (H, D_FF), jnp.float32),
        "b1": sc * jax.random.normal(ks[5], (1, D_FF), jnp.float32),
        "w2": sc * jax.random.normal(ks[6], (D_FF, H), jnp.float32),
        "b2": sc * jax.random.normal(ks[7], (1, H), jnp.float32),
        "ln1_g": 1.0 + 0.1 * jax.random.normal(ks[8], (1, H), jnp.float32),
        "ln1_b": 0.1 * jax.random.normal(ks[9], (1, H), jnp.float32),
        "ln2_g": 1.0 + 0.1 * jax.random.normal(ks[10], (1, H), jnp.float32),
        "ln2_b": 0.1 * jax.random.normal(ks[11], (1, H), jnp.float32),
    }

    x = jax.random.normal(ks[12], (B, S, H), jnp.float32)
    # padding-style mask: sample 0 has 8 valid tokens, sample 1 has 5 (rest masked)
    lens = jnp.array([8, 5], dtype=jnp.int32)
    idx = jnp.arange(S)
    valid = idx[None, :] < lens[:, None]                        # (B, S)
    mask = (valid[:, :, None] & valid[:, None, :]).astype(jnp.int32)  # (B, S, S)

    out = transformer_block(x, mask, params, num_heads=NH)
    out = jax.block_until_ready(out)

    ref = reference(x, mask, params, num_heads=NH)
    assert out.shape == (B, S, H)
    # bf16 matmul operands + tanh GELU + approx reciprocal => slightly looser tol.
    assert jnp.allclose(out, ref, atol=5e-3, rtol=2e-2), (
        f"max abs diff {jnp.max(jnp.abs(out - ref))}")
    print("KERNEL_OK")
</pallas_src>

<mosaic_0001>
module attributes {stable_mosaic.version = 11 : i64} {
  func.func @transformer_block_kernel(%arg0: i32, %arg1: memref<1x8x32xf32, #tpu.memory_space<vmem>>, %arg2: memref<1x8x8xi32, #tpu.memory_space<vmem>>, %arg3: memref<32x96xbf16, #tpu.memory_space<vmem>>, %arg4: memref<32x32xbf16, #tpu.memory_space<vmem>>, %arg5: memref<32x128xbf16, #tpu.memory_space<vmem>>, %arg6: memref<1x128xf32, #tpu.memory_space<vmem>>, %arg7: memref<128x32xbf16, #tpu.memory_space<vmem>>, %arg8: memref<1x32xf32, #tpu.memory_space<vmem>>, %arg9: memref<1x32xf32, #tpu.memory_space<vmem>>, %arg10: memref<1x32xf32, #tpu.memory_space<vmem>>, %arg11: memref<1x32xf32, #tpu.memory_space<vmem>>, %arg12: memref<1x32xf32, #tpu.memory_space<vmem>>, %arg13: memref<1x8x32xf32, #tpu.memory_space<vmem>>, %arg14: memref<8x32xf32, #tpu.memory_space<vmem>>) attributes {dimension_semantics = [#tpu.dimension_semantics<parallel>], iteration_bounds = array<i64: 2>, scalar_prefetch = 0 : i64, scratch_operands = 1 : i64, tpu.core_type = #tpu.core_type<tc>, window_params = [{transform_indices = @transform_0, window_bounds = array<i64: 1, 8, 32>}, {transform_indices = @transform_1, window_bounds = array<i64: 1, 8, 8>}, {pipeline_mode = #tpu.pipeline_mode<synchronous>, transform_indices = @transform_2, window_bounds = array<i64: 32, 96>}, {pipeline_mode = #tpu.pipeline_mode<synchronous>, transform_indices = @transform_3, window_bounds = array<i64: 32, 32>}, {pipeline_mode = #tpu.pipeline_mode<synchronous>, transform_indices = @transform_4, window_bounds = array<i64: 32, 128>}, {pipeline_mode = #tpu.pipeline_mode<synchronous>, transform_indices = @transform_5, window_bounds = array<i64: 1, 128>}, {pipeline_mode = #tpu.pipeline_mode<synchronous>, transform_indices = @transform_6, window_bounds = array<i64: 128, 32>}, {pipeline_mode = #tpu.pipeline_mode<synchronous>, transform_indices = @transform_7, window_bounds = array<i64: 1, 32>}, {pipeline_mode = #tpu.pipeline_mode<synchronous>, transform_indices = @transform_8, window_bounds = array<i64: 1, 32>}, {pipeline_mode = #tpu.pipeline_mode<synchronous>, transform_indices = @transform_9, window_bounds = array<i64: 1, 32>}, {pipeline_mode = #tpu.pipeline_mode<synchronous>, transform_indices = @transform_10, window_bounds = array<i64: 1, 32>}, {pipeline_mode = #tpu.pipeline_mode<synchronous>, transform_indices = @transform_11, window_bounds = array<i64: 1, 32>}, {transform_indices = @transform_12, window_bounds = array<i64: 1, 8, 32>}]} {
    %c0 = arith.constant 0 : index
    %c0_0 = arith.constant 0 : index
    %c0_1 = arith.constant 0 : index
    %0 = vector.load %arg1[%c0, %c0_0, %c0_1] : memref<1x8x32xf32, #tpu.memory_space<vmem>>, vector<1x8x32xf32>
    %1 = vector.shape_cast %0 : vector<1x8x32xf32> to vector<8x32xf32>
    %c0_2 = arith.constant 0 : index
    %c0_3 = arith.constant 0 : index
    %c0_4 = arith.constant 0 : index
    %2 = vector.load %arg2[%c0_2, %c0_3, %c0_4] : memref<1x8x8xi32, #tpu.memory_space<vmem>>, vector<1x8x8xi32>
    %3 = vector.shape_cast %2 : vector<1x8x8xi32> to vector<8x8xi32>
    %4 = arith.sitofp %3 : vector<8x8xi32> to vector<8x8xf32>
    %cst = arith.constant 0.000000e+00 : f32
    %5 = vector.broadcast %cst : f32 to vector<8x8xf32>
    %6 = arith.cmpf oeq, %4, %5 : vector<8x8xf32>
    %cst_5 = arith.constant -1.000000e+09 : f32
    %cst_6 = arith.constant 0.000000e+00 : f32
    %7 = vector.broadcast %cst_5 : f32 to vector<8x8xf32>
    %8 = vector.broadcast %cst_6 : f32 to vector<8x8xf32>
    %9 = arith.select %6, %7, %8 : vector<8x8xi1>, vector<8x8xf32>
    %c0_7 = arith.constant 0 : index
    %c0_8 = arith.constant 0 : index
    %10 = vector.load %arg9[%c0_7, %c0_8] : memref<1x32xf32, #tpu.memory_space<vmem>>, vector<1x32xf32>
    %c0_9 = arith.constant 0 : index
    %c0_10 = arith.constant 0 : index
    %11 = vector.load %arg10[%c0_9, %c0_10] : memref<1x32xf32, #tpu.memory_space<vmem>>, vector<1x32xf32>
    %cst_11 = arith.constant dense<0.000000e+00> : vector<8xf32>
    %12 = vector.multi_reduction <add>, %1, %cst_11 [1] : vector<8x32xf32> to vector<8xf32>
    %13 = vector.shape_cast %12 : vector<8xf32> to vector<8x1xf32>
    %cst_12 = arith.constant 3.200000e+01 : f32
    %14 = vector.broadcast %cst_12 : f32 to vector<8x1xf32>
    %15 = arith.divf %13, %14 : vector<8x1xf32>
    %16 = vector.broadcast %15 : vector<8x1xf32> to vector<8x32xf32>
    %17 = arith.subf %1, %16 : vector<8x32xf32>
    %18 = arith.mulf %17, %17 : vector<8x32xf32>
    %cst_13 = arith.constant dense<0.000000e+00> : vector<8xf32>
    %19 = vector.multi_reduction <add>, %18, %cst_13 [1] : vector<8x32xf32> to vector<8xf32>
    %20 = vector.shape_cast %19 : vector<8xf32> to vector<8x1xf32>
    %cst_14 = arith.constant 3.200000e+01 : f32
    %21 = vector.broadcast %cst_14 : f32 to vector<8x1xf32>
    %22 = arith.divf %20, %21 : vector<8x1xf32>
    %23 = vector.broadcast %15 : vector<8x1xf32> to vector<8x32xf32>
    %24 = arith.subf %1, %23 : vector<8x32xf32>
    %cst_15 = arith.constant 9.99999974E-6 : f32
    %25 = vector.broadcast %cst_15 : f32 to vector<8x1xf32>
    %26 = arith.addf %22, %25 : vector<8x1xf32>
    %27 = math.rsqrt %26 : vector<8x1xf32>
    %28 = vector.broadcast %27 : vector<8x1xf32> to vector<8x32xf32>
    %29 = arith.mulf %24, %28 : vector<8x32xf32>
    %30 = vector.broadcast %10 : vector<1x32xf32> to vector<8x32xf32>
    %31 = arith.mulf %29, %30 : vector<8x32xf32>
    %32 = vector.broadcast %11 : vector<1x32xf32> to vector<8x32xf32>
    %33 = arith.addf %31, %32 : vector<8x32xf32>
    %34 = arith.truncf %33 : vector<8x32xf32> to vector<8x32xbf16>
    %c0_16 = arith.constant 0 : index
    %c0_17 = arith.constant 0 : index
    %35 = vector.load %arg3[%c0_16, %c0_17] : memref<32x96xbf16, #tpu.memory_space<vmem>>, vector<32x96xbf16>
    %cst_18 = arith.constant dense<0.000000e+00> : vector<8x96xf32>
    %36 = tpu.matmul %34, %35, %cst_18 {dimension_numbers = #tpu.dot_dimension_numbers<[1], [0], [0], [1], [0, 0, 1, 1], [], []>} : vector<8x32xbf16>, vector<32x96xbf16>, vector<8x96xf32> -> vector<8x96xf32>
    %37 = vector.extract_strided_slice %36 {offsets = [0, 0], sizes = [8, 32], strides = [1, 1]} : vector<8x96xf32> to vector<8x32xf32>
    %cst_19 = arith.constant 0.353553385 : f32
    %38 = vector.broadcast %cst_19 : f32 to vector<8x32xf32>
    %39 = arith.mulf %37, %38 : vector<8x32xf32>
    %40 = arith.truncf %39 : vector<8x32xf32> to vector<8x32xbf16>
    %41 = vector.extract_strided_slice %36 {offsets = [0, 32], sizes = [8, 32], strides = [1, 1]} : vector<8x96xf32> to vector<8x32xf32>
    %42 = tpu.transpose %41, [1, 0] : vector<8x32xf32> -> vector<32x8xf32>
    %43 = arith.truncf %42 : vector<32x8xf32> to vector<32x8xbf16>
    %44 = vector.extract_strided_slice %36 {offsets = [0, 64], sizes = [8, 32], strides = [1, 1]} : vector<8x96xf32> to vector<8x32xf32>
    %45 = arith.truncf %44 : vector<8x32xf32> to vector<8x32xbf16>
    %46 = vector.extract_strided_slice %40 {offsets = [0, 0], sizes = [8, 8], strides = [1, 1]} : vector<8x32xbf16> to vector<8x8xbf16>
    %47 = vector.extract_strided_slice %43 {offsets = [0, 0], sizes = [8, 8], strides = [1, 1]} : vector<32x8xbf16> to vector<8x8xbf16>
    %48 = vector.extract_strided_slice %45 {offsets = [0, 0], sizes = [8, 8], strides = [1, 1]} : vector<8x32xbf16> to vector<8x8xbf16>
    %cst_20 = arith.constant dense<0.000000e+00> : vector<8x8xf32>
    %49 = tpu.matmul %46, %47, %cst_20 {dimension_numbers = #tpu.dot_dimension_numbers<[1], [0], [0], [1], [0, 0, 1, 1], [], []>} : vector<8x8xbf16>, vector<8x8xbf16>, vector<8x8xf32> -> vector<8x8xf32>
    %50 = arith.addf %49, %9 : vector<8x8xf32>
    %cst_21 = arith.constant dense<0xFF800000> : vector<8xf32>
    %51 = vector.multi_reduction <maximumf>, %50, %cst_21 [1] : vector<8x8xf32> to vector<8xf32>
    %52 = vector.shape_cast %51 : vector<8xf32> to vector<8x1xf32>
    %53 = vector.broadcast %52 : vector<8x1xf32> to vector<8x8xf32>
    %54 = arith.subf %50, %53 : vector<8x8xf32>
    %55 = math.exp %54 : vector<8x8xf32>
    %cst_22 = arith.constant dense<0.000000e+00> : vector<8xf32>
    %56 = vector.multi_reduction <add>, %55, %cst_22 [1] : vector<8x8xf32> to vector<8xf32>
    %57 = vector.shape_cast %56 : vector<8xf32> to vector<8x1xf32>
    %58 = tpu.reciprocal %57 {approx = true} : vector<8x1xf32> -> vector<8x1xf32>
    %59 = vector.broadcast %58 : vector<8x1xf32> to vector<8x8xf32>
    %60 = arith.mulf %55, %59 : vector<8x8xf32>
    %cst_23 = arith.constant 0.000000e+00 : f32
    %61 = vector.broadcast %cst_23 : f32 to vector<8x8xf32>
    %62 = arith.select %6, %61, %60 : vector<8x8xi1>, vector<8x8xf32>
    %63 = arith.truncf %62 : vector<8x8xf32> to vector<8x8xbf16>
    %cst_24 = arith.constant dense<0.000000e+00> : vector<8x8xf32>
    %64 = tpu.matmul %63, %48, %cst_24 {dimension_numbers = #tpu.dot_dimension_numbers<[1], [0], [0], [1], [0, 0, 1, 1], [], []>} : vector<8x8xbf16>, vector<8x8xbf16>, vector<8x8xf32> -> vector<8x8xf32>
    %c0_25 = arith.constant 0 : index
    %c0_26 = arith.constant 0 : index
    %65 = vector.load %arg14[%c0_25, %c0_26] : memref<8x32xf32, #tpu.memory_space<vmem>>, vector<8x8xf32>
    tpu.vector_store %arg14[%c0_25, %c0_26], %64 {strides = array<i32>} : memref<8x32xf32, #tpu.memory_space<vmem>>, vector<8x8xf32>,
    %66 = vector.extract_strided_slice %40 {offsets = [0, 8], sizes = [8, 8], strides = [1, 1]} : vector<8x32xbf16> to vector<8x8xbf16>
    %67 = vector.extract_strided_slice %43 {offsets = [8, 0], sizes = [8, 8], strides = [1, 1]} : vector<32x8xbf16> to vector<8x8xbf16>
    %68 = vector.extract_strided_slice %45 {offsets = [0, 8], sizes = [8, 8], strides = [1, 1]} : vector<8x32xbf16> to vector<8x8xbf16>
    %cst_27 = arith.constant dense<0.000000e+00> : vector<8x8xf32>
    %69 = tpu.matmul %66, %67, %cst_27 {dimension_numbers = #tpu.dot_dimension_numbers<[1], [0], [0], [1], [0, 0, 1, 1], [], []>} : vector<8x8xbf16>, vector<8x8xbf16>, vector<8x8xf32> -> vector<8x8xf32>
    %70 = arith.addf %69, %9 : vector<8x8xf32>
    %cst_28 = arith.constant dense<0xFF800000> : vector<8xf32>
    %71 = vector.multi_reduction <maximumf>, %70, %cst_28 [1] : vector<8x8xf32> to vector<8xf32>
    %72 = vector.shape_cast %71 : vector<8xf32> to vector<8x1xf32>
    %73 = vector.broadcast %72 : vector<8x1xf32> to vector<8x8xf32>
    %74 = arith.subf %70, %73 : vector<8x8xf32>
    %75 = math.exp %74 : vector<8x8xf32>
    %cst_29 = arith.constant dense<0.000000e+00> : vector<8xf32>
    %76 = vector.multi_reduction <add>, %75, %cst_29 [1] : vector<8x8xf32> to vector<8xf32>
    %77 = vector.shape_cast %76 : vector<8xf32> to vector<8x1xf32>
    %78 = tpu.reciprocal %77 {approx = true} : vector<8x1xf32> -> vector<8x1xf32>
    %79 = vector.broadcast %78 : vector<8x1xf32> to vector<8x8xf32>
    %80 = arith.mulf %75, %79 : vector<8x8xf32>
    %cst_30 = arith.constant 0.000000e+00 : f32
    %81 = vector.broadcast %cst_30 : f32 to vector<8x8xf32>
    %82 = arith.select %6, %81, %80 : vector<8x8xi1>, vector<8x8xf32>
    %83 = arith.truncf %82 : vector<8x8xf32> to vector<8x8xbf16>
    %cst_31 = arith.constant dense<0.000000e+00> : vector<8x8xf32>
    %84 = tpu.matmul %83, %68, %cst_31 {dimension_numbers = #tpu.dot_dimension_numbers<[1], [0], [0], [1], [0, 0, 1, 1], [], []>} : vector<8x8xbf16>, vector<8x8xbf16>, vector<8x8xf32> -> vector<8x8xf32>
    %c0_32 = arith.constant 0 : index
    %c8 = arith.constant 8 : index
    %85 = vector.load %arg14[%c0_32, %c8] : memref<8x32xf32, #tpu.memory_space<vmem>>, vector<8x8xf32>
    tpu.vector_store %arg14[%c0_32, %c8], %84 {strides = array<i32>} : memref<8x32xf32, #tpu.memory_space<vmem>>, vector<8x8xf32>,
    %86 = vector.extract_strided_slice %40 {offsets = [0, 16], sizes = [8, 8], strides = [1, 1]} : vector<8x32xbf16> to vector<8x8xbf16>
    %87 = vector.extract_strided_slice %43 {offsets = [16, 0], sizes = [8, 8], strides = [1, 1]} : vector<32x8xbf16> to vector<8x8xbf16>
    %88 = vector.extract_strided_slice %45 {offsets = [0, 16], sizes = [8, 8], strides = [1, 1]} : vector<8x32xbf16> to vector<8x8xbf16>
    %cst_33 = arith.constant dense<0.000000e+00> : vector<8x8xf32>
    %89 = tpu.matmul %86, %87, %cst_33 {dimension_numbers = #tpu.dot_dimension_numbers<[1], [0], [0], [1], [0, 0, 1, 1], [], []>} : vector<8x8xbf16>, vector<8x8xbf16>, vector<8x8xf32> -> vector<8x8xf32>
    %90 = arith.addf %89, %9 : vector<8x8xf32>
    %cst_34 = arith.constant dense<0xFF800000> : vector<8xf32>
    %91 = vector.multi_reduction <maximumf>, %90, %cst_34 [1] : vector<8x8xf32> to vector<8xf32>
    %92 = vector.shape_cast %91 : vector<8xf32> to vector<8x1xf32>
    %93 = vector.broadcast %92 : vector<8x1xf32> to vector<8x8xf32>
    %94 = arith.subf %90, %93 : vector<8x8xf32>
    %95 = math.exp %94 : vector<8x8xf32>
    %cst_35 = arith.constant dense<0.000000e+00> : vector<8xf32>
    %96 = vector.multi_reduction <add>, %95, %cst_35 [1] : vector<8x8xf32> to vector<8xf32>
    %97 = vector.shape_cast %96 : vector<8xf32> to vector<8x1xf32>
    %98 = tpu.reciprocal %97 {approx = true} : vector<8x1xf32> -> vector<8x1xf32>
    %99 = vector.broadcast %98 : vector<8x1xf32> to vector<8x8xf32>
    %100 = arith.mulf %95, %99 : vector<8x8xf32>
    %cst_36 = arith.constant 0.000000e+00 : f32
    %101 = vector.broadcast %cst_36 : f32 to vector<8x8xf32>
    %102 = arith.select %6, %101, %100 : vector<8x8xi1>, vector<8x8xf32>
    %103 = arith.truncf %102 : vector<8x8xf32> to vector<8x8xbf16>
    %cst_37 = arith.constant dense<0.000000e+00> : vector<8x8xf32>
    %104 = tpu.matmul %103, %88, %cst_37 {dimension_numbers = #tpu.dot_dimension_numbers<[1], [0], [0], [1], [0, 0, 1, 1], [], []>} : vector<8x8xbf16>, vector<8x8xbf16>, vector<8x8xf32> -> vector<8x8xf32>
    %c0_38 = arith.constant 0 : index
    %c16 = arith.constant 16 : index
    %105 = vector.load %arg14[%c0_38, %c16] : memref<8x32xf32, #tpu.memory_space<vmem>>, vector<8x8xf32>
    tpu.vector_store %arg14[%c0_38, %c16], %104 {strides = array<i32>} : memref<8x32xf32, #tpu.memory_space<vmem>>, vector<8x8xf32>,
    %106 = vector.extract_strided_slice %40 {offsets = [0, 24], sizes = [8, 8], strides = [1, 1]} : vector<8x32xbf16> to vector<8x8xbf16>
    %107 = vector.extract_strided_slice %43 {offsets = [24, 0], sizes = [8, 8], strides = [1, 1]} : vector<32x8xbf16> to vector<8x8xbf16>
    %108 = vector.extract_strided_slice %45 {offsets = [0, 24], sizes = [8, 8], strides = [1, 1]} : vector<8x32xbf16> to vector<8x8xbf16>
    %cst_39 = arith.constant dense<0.000000e+00> : vector<8x8xf32>
    %109 = tpu.matmul %106, %107, %cst_39 {dimension_numbers = #tpu.dot_dimension_numbers<[1], [0], [0], [1], [0, 0, 1, 1], [], []>} : vector<8x8xbf16>, vector<8x8xbf16>, vector<8x8xf32> -> vector<8x8xf32>
    %110 = arith.addf %109, %9 : vector<8x8xf32>
    %cst_40 = arith.constant dense<0xFF800000> : vector<8xf32>
    %111 = vector.multi_reduction <maximumf>, %110, %cst_40 [1] : vector<8x8xf32> to vector<8xf32>
    %112 = vector.shape_cast %111 : vector<8xf32> to vector<8x1xf32>
    %113 = vector.broadcast %112 : vector<8x1xf32> to vector<8x8xf32>
    %114 = arith.subf %110, %113 : vector<8x8xf32>
    %115 = math.exp %114 : vector<8x8xf32>
    %cst_41 = arith.constant dense<0.000000e+00> : vector<8xf32>
    %116 = vector.multi_reduction <add>, %115, %cst_41 [1] : vector<8x8xf32> to vector<8xf32>
    %117 = vector.shape_cast %116 : vector<8xf32> to vector<8x1xf32>
    %118 = tpu.reciprocal %117 {approx = true} : vector<8x1xf32> -> vector<8x1xf32>
    %119 = vector.broadcast %118 : vector<8x1xf32> to vector<8x8xf32>
    %120 = arith.mulf %115, %119 : vector<8x8xf32>
    %cst_42 = arith.constant 0.000000e+00 : f32
    %121 = vector.broadcast %cst_42 : f32 to vector<8x8xf32>
    %122 = arith.select %6, %121, %120 : vector<8x8xi1>, vector<8x8xf32>
    %123 = arith.truncf %122 : vector<8x8xf32> to vector<8x8xbf16>
    %cst_43 = arith.constant dense<0.000000e+00> : vector<8x8xf32>
    %124 = tpu.matmul %123, %108, %cst_43 {dimension_numbers = #tpu.dot_dimension_numbers<[1], [0], [0], [1], [0, 0, 1, 1], [], []>} : vector<8x8xbf16>, vector<8x8xbf16>, vector<8x8xf32> -> vector<8x8xf32>
    %c0_44 = arith.constant 0 : index
    %c24 = arith.constant 24 : index
    %125 = vector.load %arg14[%c0_44, %c24] : memref<8x32xf32, #tpu.memory_space<vmem>>, vector<8x8xf32>
    tpu.vector_store %arg14[%c0_44, %c24], %124 {strides = array<i32>} : memref<8x32xf32, #tpu.memory_space<vmem>>, vector<8x8xf32>,
    %c0_45 = arith.constant 0 : index
    %c0_46 = arith.constant 0 : index
    %126 = vector.load %arg14[%c0_45, %c0_46] : memref<8x32xf32, #tpu.memory_space<vmem>>, vector<8x32xf32>
    %127 = arith.truncf %126 : vector<8x32xf32> to vector<8x32xbf16>
    %c0_47 = arith.constant 0 : index
    %c0_48 = arith.constant 0 : index
    %128 = vector.load %arg4[%c0_47, %c0_48] : memref<32x32xbf16, #tpu.memory_space<vmem>>, vector<32x32xbf16>
    %cst_49 = arith.constant dense<0.000000e+00> : vector<8x32xf32>
    %129 = tpu.matmul %127, %128, %cst_49 {dimension_numbers = #tpu.dot_dimension_numbers<[1], [0], [0], [1], [0, 0, 1, 1], [], []>} : vector<8x32xbf16>, vector<32x32xbf16>, vector<8x32xf32> -> vector<8x32xf32>
    %130 = arith.addf %1, %129 : vector<8x32xf32>
    %c0_50 = arith.constant 0 : index
    %c0_51 = arith.constant 0 : index
    %131 = vector.load %arg11[%c0_50, %c0_51] : memref<1x32xf32, #tpu.memory_space<vmem>>, vector<1x32xf32>
    %c0_52 = arith.constant 0 : index
    %c0_53 = arith.constant 0 : index
    %132 = vector.load %arg12[%c0_52, %c0_53] : memref<1x32xf32, #tpu.memory_space<vmem>>, vector<1x32xf32>
    %cst_54 = arith.constant dense<0.000000e+00> : vector<8xf32>
    %133 = vector.multi_reduction <add>, %130, %cst_54 [1] : vector<8x32xf32> to vector<8xf32>
    %134 = vector.shape_cast %133 : vector<8xf32> to vector<8x1xf32>
    %cst_55 = arith.constant 3.200000e+01 : f32
    %135 = vector.broadcast %cst_55 : f32 to vector<8x1xf32>
    %136 = arith.divf %134, %135 : vector<8x1xf32>
    %137 = vector.broadcast %136 : vector<8x1xf32> to vector<8x32xf32>
    %138 = arith.subf %130, %137 : vector<8x32xf32>
    %139 = arith.mulf %138, %138 : vector<8x32xf32>
    %cst_56 = arith.constant dense<0.000000e+00> : vector<8xf32>
    %140 = vector.multi_reduction <add>, %139, %cst_56 [1] : vector<8x32xf32> to vector<8xf32>
    %141 = vector.shape_cast %140 : vector<8xf32> to vector<8x1xf32>
    %cst_57 = arith.constant 3.200000e+01 : f32
    %142 = vector.broadcast %cst_57 : f32 to vector<8x1xf32>
    %143 = arith.divf %141, %142 : vector<8x1xf32>
    %144 = vector.broadcast %136 : vector<8x1xf32> to vector<8x32xf32>
    %145 = arith.subf %130, %144 : vector<8x32xf32>
    %cst_58 = arith.constant 9.99999974E-6 : f32
    %146 = vector.broadcast %cst_58 : f32 to vector<8x1xf32>
    %147 = arith.addf %143, %146 : vector<8x1xf32>
    %148 = math.rsqrt %147 : vector<8x1xf32>
    %149 = vector.broadcast %148 : vector<8x1xf32> to vector<8x32xf32>
    %150 = arith.mulf %145, %149 : vector<8x32xf32>
    %151 = vector.broadcast %131 : vector<1x32xf32> to vector<8x32xf32>
    %152 = arith.mulf %150, %151 : vector<8x32xf32>
    %153 = vector.broadcast %132 : vector<1x32xf32> to vector<8x32xf32>
    %154 = arith.addf %152, %153 : vector<8x32xf32>
    %155 = arith.truncf %154 : vector<8x32xf32> to vector<8x32xbf16>
    %c0_59 = arith.constant 0 : index
    %c0_60 = arith.constant 0 : index
    %156 = vector.load %arg8[%c0_59, %c0_60] : memref<1x32xf32, #tpu.memory_space<vmem>>, vector<1x32xf32>
    %157 = vector.shape_cast %156 : vector<1x32xf32> to vector<1x32xf32>
    %158 = vector.broadcast %157 : vector<1x32xf32> to vector<8x32xf32>
    %c0_61 = arith.constant 0 : index
    %c0_62 = arith.constant 0 : index
    %159 = vector.load %arg5[%c0_61, %c0_62] : memref<32x128xbf16, #tpu.memory_space<vmem>>, vector<32x128xbf16>
    %cst_63 = arith.constant dense<0.000000e+00> : vector<8x128xf32>
    %160 = tpu.matmul %155, %159, %cst_63 {dimension_numbers = #tpu.dot_dimension_numbers<[1], [0], [0], [1], [0, 0, 1, 1], [], []>} : vector<8x32xbf16>, vector<32x128xbf16>, vector<8x128xf32> -> vector<8x128xf32>
    %c0_64 = arith.constant 0 : index
    %c0_65 = arith.constant 0 : index
    %161 = vector.load %arg6[%c0_64, %c0_65] : memref<1x128xf32, #tpu.memory_space<vmem>>, vector<1x128xf32>
    %162 = vector.broadcast %161 : vector<1x128xf32> to vector<8x128xf32>
    %163 = arith.addf %160, %162 : vector<8x128xf32>
    %cst_66 = arith.constant 5.000000e-01 : f32
    %164 = vector.broadcast %cst_66 : f32 to vector<8x128xf32>
    %165 = arith.mulf %164, %163 : vector<8x128xf32>
    %166 = arith.mulf %163, %163 : vector<8x128xf32>
    %167 = arith.mulf %166, %163 : vector<8x128xf32>
    %cst_67 = arith.constant 4.471500e-02 : f32
    %168 = vector.broadcast %cst_67 : f32 to vector<8x128xf32>
    %169 = arith.mulf %168, %167 : vector<8x128xf32>
    %170 = arith.addf %163, %169 : vector<8x128xf32>
    %cst_68 = arith.constant 0.797884583 : f32
    %171 = vector.broadcast %cst_68 : f32 to vector<8x128xf32>
    %172 = arith.mulf %171, %170 : vector<8x128xf32>
    %173 = math.tanh %172 : vector<8x128xf32>
    %cst_69 = arith.constant 1.000000e+00 : f32
    %174 = vector.broadcast %cst_69 : f32 to vector<8x128xf32>
    %175 = arith.addf %174, %173 : vector<8x128xf32>
    %176 = arith.mulf %165, %175 : vector<8x128xf32>
    %177 = arith.truncf %176 : vector<8x128xf32> to vector<8x128xbf16>
    %c0_70 = arith.constant 0 : index
    %c0_71 = arith.constant 0 : index
    %178 = vector.load %arg7[%c0_70, %c0_71] : memref<128x32xbf16, #tpu.memory_space<vmem>>, vector<128x32xbf16>
    %cst_72 = arith.constant dense<0.000000e+00> : vector<8x32xf32>
    %179 = tpu.matmul %177, %178, %cst_72 {dimension_numbers = #tpu.dot_dimension_numbers<[1], [0], [0], [1], [0, 0, 1, 1], [], []>} : vector<8x128xbf16>, vector<128x32xbf16>, vector<8x32xf32> -> vector<8x32xf32>
    %180 = arith.addf %158, %179 : vector<8x32xf32>
    %cst_73 = arith.constant dense<0.000000e+00> : vector<8xf32>
    %181 = vector.multi_reduction <add>, %4, %cst_73 [1] : vector<8x8xf32> to vector<8xf32>
    %182 = vector.shape_cast %181 : vector<8xf32> to vector<8x1xf32>
    %cst_74 = arith.constant 0.000000e+00 : f32
    %183 = vector.broadcast %cst_74 : f32 to vector<8x1xf32>
    %184 = arith.cmpf ogt, %182, %183 : vector<8x1xf32>
    %cst_75 = arith.constant 0.000000e+00 : f32
    %185 = vector.shape_cast %184 : vector<8x1xi1> to vector<8x1xi1>
    %186 = vector.broadcast %185 : vector<8x1xi1> to vector<8x32xi1>
    %187 = vector.broadcast %cst_75 : f32 to vector<8x32xf32>
    %188 = arith.select %186, %180, %187 : vector<8x32xi1>, vector<8x32xf32>
    %189 = arith.addf %130, %188 : vector<8x32xf32>
    %c0_76 = arith.constant 0 : index
    %c0_77 = arith.constant 0 : index
    %c0_78 = arith.constant 0 : index
    %190 = vector.load %arg13[%c0_76, %c0_77, %c0_78] : memref<1x8x32xf32, #tpu.memory_space<vmem>>, vector<1x8x32xf32>
    %191 = vector.shape_cast %190 : vector<1x8x32xf32> to vector<8x32xf32>
    %192 = vector.shape_cast %189 : vector<8x32xf32> to vector<1x8x32xf32>
    tpu.vector_store %arg13[%c0_76, %c0_77, %c0_78], %192 {strides = array<i32>} : memref<1x8x32xf32, #tpu.memory_space<vmem>>, vector<1x8x32xf32>,
    return
  }
  func.func @transform_0(%arg0: i32) -> (i32, i32, i32) {
    %c0_i32 = arith.constant 0 : i32
    %c0_i32_0 = arith.constant 0 : i32
    %c0_i32_1 = arith.constant 0 : i32
    return %arg0, %c0_i32, %c0_i32_0 : i32, i32, i32
  }
  func.func @transform_1(%arg0: i32) -> (i32, i32, i32) {
    %c0_i32 = arith.constant 0 : i32
    %c0_i32_0 = arith.constant 0 : i32
    %c0_i32_1 = arith.constant 0 : i32
    return %arg0, %c0_i32, %c0_i32_0 : i32, i32, i32
  }
  func.func @transform_2(%arg0: i32) -> (i32, i32) {
    %c0_i32 = arith.constant 0 : i32
    %c0_i32_0 = arith.constant 0 : i32
    %c0_i32_1 = arith.constant 0 : i32
    return %c0_i32, %c0_i32_0 : i32, i32
  }
  func.func @transform_3(%arg0: i32) -> (i32, i32) {
    %c0_i32 = arith.constant 0 : i32
    %c0_i32_0 = arith.constant 0 : i32
    %c0_i32_1 = arith.constant 0 : i32
    return %c0_i32, %c0_i32_0 : i32, i32
  }
  func.func @transform_4(%arg0: i32) -> (i32, i32) {
    %c0_i32 = arith.constant 0 : i32
    %c0_i32_0 = arith.constant 0 : i32
    %c0_i32_1 = arith.constant 0 : i32
    return %c0_i32, %c0_i32_0 : i32, i32
  }
  func.func @transform_5(%arg0: i32) -> (i32, i32) {
    %c0_i32 = arith.constant 0 : i32
    %c0_i32_0 = arith.constant 0 : i32
    %c0_i32_1 = arith.constant 0 : i32
    return %c0_i32, %c0_i32_0 : i32, i32
  }
  func.func @transform_6(%arg0: i32) -> (i32, i32) {
    %c0_i32 = arith.constant 0 : i32
    %c0_i32_0 = arith.constant 0 : i32
    %c0_i32_1 = arith.constant 0 : i32
    return %c0_i32, %c0_i32_0 : i32, i32
  }
  func.func @transform_7(%arg0: i32) -> (i32, i32) {
    %c0_i32 = arith.constant 0 : i32
    %c0_i32_0 = arith.constant 0 : i32
    %c0_i32_1 = arith.constant 0 : i32
    return %c0_i32, %c0_i32_0 : i32, i32
  }
  func.func @transform_8(%arg0: i32) -> (i32, i32) {
    %c0_i32 = arith.constant 0 : i32
    %c0_i32_0 = arith.constant 0 : i32
    %c0_i32_1 = arith.constant 0 : i32
    return %c0_i32, %c0_i32_0 : i32, i32
  }
  func.func @transform_9(%arg0: i32) -> (i32, i32) {
    %c0_i32 = arith.constant 0 : i32
    %c0_i32_0 = arith.constant 0 : i32
    %c0_i32_1 = arith.constant 0 : i32
    return %c0_i32, %c0_i32_0 : i32, i32
  }
  func.func @transform_10(%arg0: i32) -> (i32, i32) {
    %c0_i32 = arith.constant 0 : i32
    %c0_i32_0 = arith.constant 0 : i32
    %c0_i32_1 = arith.constant 0 : i32
    return %c0_i32, %c0_i32_0 : i32, i32
  }
  func.func @transform_11(%arg0: i32) -> (i32, i32) {
    %c0_i32 = arith.constant 0 : i32
    %c0_i32_0 = arith.constant 0 : i32
    %c0_i32_1 = arith.constant 0 : i32
    return %c0_i32, %c0_i32_0 : i32, i32
  }
  func.func @transform_12(%arg0: i32) -> (i32, i32, i32) {
    %c0_i32 = arith.constant 0 : i32
    %c0_i32_0 = arith.constant 0 : i32
    %c0_i32_1 = arith.constant 0 : i32
    return %arg0, %c0_i32, %c0_i32_0 : i32, i32, i32
  }
}

</mosaic_0001>

<llo_original>
// kernel: tpu_custom_call.1
$region0: #{tpu_custom_call.1}
  #allocation0 [shape = 'u32[]', space=smem, size = 0x4, offset = 0x4, fixed_abs, tag = 'smem constant byte address 0x4 - core index']
  #allocation1 [shape = 'u32[144,128]{1,0:T(1,128)}', space=vmem, size = 0x12000, scoped, tag = 'internal scratch']
  #allocation2 [shape = 'f32[8,32]{1,0:T(8,128)}', space=vmem, size = 0x1000, scoped, tag = 'scratch operand']
  %s0 = inlined_call_operand.hbm [shape: f32[2,8,32], index: 0, kind: input, shape index: {}]
  %s1 = inlined_call_operand.hbm [shape: s32[2,8,8], index: 1, kind: input, shape index: {}]
  %s2 = inlined_call_operand.hbm [shape: bf16[32,96], index: 2, kind: input, shape index: {}]
  %s3 = inlined_call_operand.hbm [shape: bf16[32,32], index: 3, kind: input, shape index: {}]
  %s4 = inlined_call_operand.hbm [shape: bf16[32,128], index: 4, kind: input, shape index: {}]
  %s5 = inlined_call_operand.hbm [shape: f32[1,128], index: 5, kind: input, shape index: {}]
  %s6 = inlined_call_operand.hbm [shape: bf16[128,32], index: 6, kind: input, shape index: {}]
  %s7 = inlined_call_operand.hbm [shape: f32[1,32], index: 7, kind: input, shape index: {}]
  %s8 = inlined_call_operand.hbm [shape: f32[1,32], index: 8, kind: input, shape index: {}]
  %s9 = inlined_call_operand.hbm [shape: f32[1,32], index: 9, kind: input, shape index: {}]
  %s10 = inlined_call_operand.hbm [shape: f32[1,32], index: 10, kind: input, shape index: {}]
  %s11 = inlined_call_operand.hbm [shape: f32[1,32], index: 11, kind: input, shape index: {}]
  %s12 = inlined_call_operand.hbm [shape: f32[2,8,32], index: 12, kind: output, shape index: {}]
  %s13 = sld [smem:[#allocation0]]
  $region129: #{tpu_custom_call.1} parent=0
    _
  %s15 = ssub.s32 1, %s13
  %s16 = scalar_select 0, %s15, %s13
  $region1: #{tpu_custom_call.1} parent=0
    #allocation3 [shape = 'u8[8192]{0}', space=vmem, size = 0x2000, scoped, tag = 'input window, operand 0']
    #allocation4 [shape = 's32[2]{0}', space=sflag, size = 0x8, scoped, tag = 'scoped memory for tpu_custom_call.1']
    #allocation5 [shape = 's32[2]{0}', space=sflag, size = 0x8, scoped, tag = 'scoped memory for tpu_custom_call.1']
    #allocation6 [shape = 'u8[8192]{0}', space=vmem, size = 0x2000, scoped, tag = 'input window, operand 1']
    #allocation7 [shape = 's32[2]{0}', space=sflag, size = 0x8, scoped, tag = 'scoped memory for tpu_custom_call.1']
    #allocation8 [shape = 'u8[8192]{0}', space=vmem, size = 0x2000, scoped, tag = 'input window, operand 2, single buffered']
    #allocation9 [shape = 'u8[8192]{0}', space=vmem, size = 0x2000, scoped, tag = 'input window, operand 3, single buffered']
    #allocation10 [shape = 's32[1]{0}', space=sflag, size = 0x4, scoped, tag = 'scoped memory for tpu_custom_call.1']
    #allocation11 [shape = 'u8[8192]{0}', space=vmem, size = 0x2000, scoped, tag = 'input window, operand 4, single buffered']
    #allocation12 [shape = 'u8[512]{0}', space=vmem, size = 0x400, scoped, tag = 'input window, operand 5, single buffered']
    #allocation13 [shape = 's32[1]{0}', space=sflag, size = 0x4, scoped, tag = 'scoped memory for tpu_custom_call.1']
    #allocation14 [shape = 'u8[32768]{0}', space=vmem, size = 0x8000, scoped, tag = 'input window, operand 6, single buffered']
    #allocation15 [shape = 'u8[512]{0}', space=vmem, size = 0x400, scoped, tag = 'input window, operand 7, single buffered']
    #allocation16 [shape = 's32[1]{0}', space=sflag, size = 0x4, scoped, tag = 'scoped memory for tpu_custom_call.1']
    #allocation17 [shape = 'u8[512]{0}', space=vmem, size = 0x400, scoped, tag = 'input window, operand 8, single buffered']
    #allocation18 [shape = 'u8[512]{0}', space=vmem, size = 0x400, scoped, tag = 'input window, operand 9, single buffered']
    #allocation19 [shape = 's32[1]{0}', space=sflag, size = 0x4, scoped, tag = 'scoped memory for tpu_custom_call.1']
    #allocation20 [shape = 'u8[512]{0}', space=vmem, size = 0x400, scoped, tag = 'input window, operand 10, single buffered']
    #allocation21 [shape = 'u8[512]{0}', space=vmem, size = 0x400, scoped, tag = 'input window, operand 11, single buffered']
    #allocation22 [shape = 's32[1]{0}', space=sflag, size = 0x4, scoped, tag = 'scoped memory for tpu_custom_call.1']
    #allocation23 [shape = 'u8[8192]{0}', space=vmem, size = 0x2000, scoped, tag = 'output window, operand 0']
    %17 = vsyncpa [#allocation4], 0
    %s18 = scalar_lea.sflag [#allocation4], 1
    %19 = vsyncpa %s18, 0
    %20 = vsyncpa [#allocation7], 0
    %s21 = scalar_lea.sflag [#allocation7], 1
    %22 = vsyncpa %s21, 0
    %23 = vsyncpa [#allocation10], 0
    %24 = vsyncpa [#allocation13], 0
    %25 = vsyncpa [#allocation16], 0
    %26 = vsyncpa [#allocation19], 0
    %27 = vsyncpa [#allocation22], 0
    %28 = vsyncpa [#allocation5], 0
    %s29 = scalar_lea.sflag [#allocation5], 1
    %30 = vsyncpa %s29, 0
    loop: start=0, step=1, limit=4
    $region2: #{tpu_custom_call.1} parent=1 // loop_pre_header
      _
    $region3: #{tpu_custom_call.1} parent=1 // loop_header
      %s32 = sphi 0, %s36
      %p33 = scmp.ge.s32.totalorder %s32, 4
      %s42 = sphi 0, %s44
      %s45 = sphi 0, %s42
      %s46 = sphi 0, %s45
      %s62 = sphi 0, %s46
      %s68 = sphi 0, %s70
      %s71 = sphi 0, %s68
      %s72 = sphi 0, %s71
      %s88 = sphi 0, %s72
      %s92 = sphi 0, %s92
      %s94 = sphi 0, %s92
      %s95 = sphi 0, %s94
      %s109 = sphi 0, %s95
      %s113 = sphi 0, %s113
      %s115 = sphi 0, %s113
      %s116 = sphi 0, %s115
      %s130 = sphi 0, %s116
      %s134 = sphi 0, %s134
      %s136 = sphi 0, %s134
      %s137 = sphi 0, %s136
      %s151 = sphi 0, %s137
      %s155 = sphi 0, %s155
      %s157 = sphi 0, %s155
      %s158 = sphi 0, %s157
      %s172 = sphi 0, %s158
      %s176 = sphi 0, %s176
      %s178 = sphi 0, %s176
      %s179 = sphi 0, %s178
      %s193 = sphi 0, %s179
      %s197 = sphi 0, %s197
      %s199 = sphi 0, %s197
      %s200 = sphi 0, %s199
      %s214 = sphi 0, %s200
      %s218 = sphi 0, %s218
      %s220 = sphi 0, %s218
      %s221 = sphi 0, %s220
      %s235 = sphi 0, %s221
      %s239 = sphi 0, %s239
      %s241 = sphi 0, %s239
      %s242 = sphi 0, %s241
      %s256 = sphi 0, %s242
      %s260 = sphi 0, %s260
      %s262 = sphi 0, %s260
      %s263 = sphi 0, %s262
      %s277 = sphi 0, %s263
      %s281 = sphi 0, %s281
      %s283 = sphi 0, %s281
      %s284 = sphi 0, %s283
      %s298 = sphi 0, %s284
      %s304 = sphi 0, %s306
      %s307 = sphi 0, %s304
      %s308 = sphi 0, %s307
      %s324 = sphi 0, %s308
    $region4: #{tpu_custom_call.1} parent=1 // loop_header_branch
      %35 = sbr.rel (%p33) target = $region8
    $region5: #{tpu_custom_call.1} parent=1 // loop_body
      %s37 = ssub.s32 %s32, 1
      %s38 = ssub.s32 %s32, 2
      %s39 = sadd.s32 %s32, 1
      %s40 = ssub.s32 %s32, %s39
      %p41 = scmp.eq.s32.totalorder %s40, 0
      %s43 = sadd.s32 %s42, 1
      %s44 = scalar_select %p41, %s42, %s43
      %p47 = pneg %p41
      %p48 = scmp.eq.s32.totalorder %s32, 1
      %p49 = por %p47, %p48
      %p50 = scmp.ne.s32.totalorder %s42, %s45
      %p51 = scmp.eq.s32.totalorder %s32, 0
      %p52 = por %p50, %p51
      %p53 = scmp.ne.s32.totalorder %s42, %s45
      %p54 = scmp.eq.s32.totalorder %s37, 1
      %p55 = por %p53, %p54
      %p56 = scmp.ne.s32.totalorder %s45, %s46
      %p57 = scmp.eq.s32.totalorder %s37, 0
      %p58 = por %p56, %p57
      %p59 = scmp.ne.s32.totalorder %s45, %s46
      %p60 = scmp.eq.s32.totalorder %s38, 1
      %p61 = por %p59, %p60
      %p63 = scmp.ne.s32.totalorder %s46, %s62
      %p64 = scmp.eq.s32.totalorder %s38, 0
      %p65 = por %p63, %p64
      %s66 = ssub.s32 %s32, %s39
      %p67 = scmp.eq.s32.totalorder %s66, 0
      %s69 = sadd.s32 %s68, 1
      %s70 = scalar_select %p67, %s68, %s69
      %p73 = pneg %p67
      %p74 = scmp.eq.s32.totalorder %s32, 1
      %p75 = por %p73, %p74
      %p76 = scmp.ne.s32.totalorder %s68, %s71
      %p77 = scmp.eq.s32.totalorder %s32, 0
      %p78 = por %p76, %p77
      %p79 = scmp.ne.s32.totalorder %s68, %s71
      %p80 = scmp.eq.s32.totalorder %s37, 1
      %p81 = por %p79, %p80
      %p82 = scmp.ne.s32.totalorder %s71, %s72
      %p83 = scmp.eq.s32.totalorder %s37, 0
      %p84 = por %p82, %p83
      %p85 = scmp.ne.s32.totalorder %s71, %s72
      %p86 = scmp.eq.s32.totalorder %s38, 1
      %p87 = por %p85, %p86
      %p89 = scmp.ne.s32.totalorder %s72, %s88
      %p90 = scmp.eq.s32.totalorder %s38, 0
      %p91 = por %p89, %p90
      %s93 = sadd.s32 %s92, 1
      %p96 = scmp.eq.s32.totalorder %s32, 1
      %p97 = scmp.ne.s32.totalorder %s92, %s94
      %p98 = scmp.eq.s32.totalorder %s32, 0
      %p99 = por %p97, %p98
      %p100 = scmp.ne.s32.totalorder %s92, %s94
      %p101 = scmp.eq.s32.totalorder %s37, 1
      %p102 = por %p100, %p101
      %p103 = scmp.ne.s32.totalorder %s94, %s95
      %p104 = scmp.eq.s32.totalorder %s37, 0
      %p105 = por %p103, %p104
      %p106 = scmp.ne.s32.totalorder %s94, %s95
      %p107 = scmp.eq.s32.totalorder %s38, 1
      %p108 = por %p106, %p107
      %p110 = scmp.ne.s32.totalorder %s95, %s109
      %p111 = scmp.eq.s32.totalorder %s38, 0
      %p112 = por %p110, %p111
      %s114 = sadd.s32 %s113, 1
      %p117 = scmp.eq.s32.totalorder %s32, 1
      %p118 = scmp.ne.s32.totalorder %s113, %s115
      %p119 = scmp.eq.s32.totalorder %s32, 0
      %p120 = por %p118, %p119
      %p121 = scmp.ne.s32.totalorder %s113, %s115
      %p122 = scmp.eq.s32.totalorder %s37, 1
      %p123 = por %p121, %p122
      %p124 = scmp.ne.s32.totalorder %s115, %s116
      %p125 = scmp.eq.s32.totalorder %s37, 0
      %p126 = por %p124, %p125
      %p127 = scmp.ne.s32.totalorder %s115, %s116
      %p128 = scmp.eq.s32.totalorder %s38, 1
      %p129 = por %p127, %p128
      %p131 = scmp.ne.s32.totalorder %s116, %s130
      %p132 = scmp.eq.s32.totalorder %s38, 0
      %p133 = por %p131, %p132
      %s135 = sadd.s32 %s134, 1
      %p138 = scmp.eq.s32.totalorder %s32, 1
      %p139 = scmp.ne.s32.totalorder %s134, %s136
      %p140 = scmp.eq.s32.totalorder %s32, 0
      %p141 = por %p139, %p140
      %p142 = scmp.ne.s32.totalorder %s134, %s136
      %p143 = scmp.eq.s32.totalorder %s37, 1
      %p144 = por %p142, %p143
      %p145 = scmp.ne.s32.totalorder %s136, %s137
      %p146 = scmp.eq.s32.totalorder %s37, 0
      %p147 = por %p145, %p146
      %p148 = scmp.ne.s32.totalorder %s136, %s137
      %p149 = scmp.eq.s32.totalorder %s38, 1
      %p150 = por %p148, %p149
      %p152 = scmp.ne.s32.totalorder %s137, %s151
      %p153 = scmp.eq.s32.totalorder %s38, 0
      %p154 = por %p152, %p153
      %s156 = sadd.s32 %s155, 1
      %p159 = scmp.eq.s32.totalorder %s32, 1
      %p160 = scmp.ne.s32.totalorder %s155, %s157
      %p161 = scmp.eq.s32.totalorder %s32, 0
      %p162 = por %p160, %p161
      %p163 = scmp.ne.s32.totalorder %s155, %s157
      %p164 = scmp.eq.s32.totalorder %s37, 1
      %p165 = por %p163, %p164
      %p166 = scmp.ne.s32.totalorder %s157, %s158
      %p167 = scmp.eq.s32.totalorder %s37, 0
      %p168 = por %p166, %p167
      %p169 = scmp.ne.s32.totalorder %s157, %s158
      %p170 = scmp.eq.s32.totalorder %s38, 1
      %p171 = por %p169, %p170
      %p173 = scmp.ne.s32.totalorder %s158, %s172
      %p174 = scmp.eq.s32.totalorder %s38, 0
      %p175 = por %p173, %p174
      %s177 = sadd.s32 %s176, 1
      %p180 = scmp.eq.s32.totalorder %s32, 1
      %p181 = scmp.ne.s32.totalorder %s176, %s178
      %p182 = scmp.eq.s32.totalorder %s32, 0
      %p183 = por %p181, %p182
      %p184 = scmp.ne.s32.totalorder %s176, %s178
      %p185 = scmp.eq.s32.totalorder %s37, 1
      %p186 = por %p184, %p185
      %p187 = scmp.ne.s32.totalorder %s178, %s179
      %p188 = scmp.eq.s32.totalorder %s37, 0
      %p189 = por %p187, %p188
      %p190 = scmp.ne.s32.totalorder %s178, %s179
      %p191 = scmp.eq.s32.totalorder %s38, 1
      %p192 = por %p190, %p191
      %p194 = scmp.ne.s32.totalorder %s179, %s193
      %p195 = scmp.eq.s32.totalorder %s38, 0
      %p196 = por %p194, %p195
      %s198 = sadd.s32 %s197, 1
      %p201 = scmp.eq.s32.totalorder %s32, 1
      %p202 = scmp.ne.s32.totalorder %s197, %s199
      %p203 = scmp.eq.s32.totalorder %s32, 0
      %p204 = por %p202, %p203
      %p205 = scmp.ne.s32.totalorder %s197, %s199
      %p206 = scmp.eq.s32.totalorder %s37, 1
      %p207 = por %p205, %p206
      %p208 = scmp.ne.s32.totalorder %s199, %s200
      %p209 = scmp.eq.s32.totalorder %s37, 0
      %p210 = por %p208, %p209
      %p211 = scmp.ne.s32.totalorder %s199, %s200
      %p212 = scmp.eq.s32.totalorder %s38, 1
      %p213 = por %p211, %p212
      %p215 = scmp.ne.s32.totalorder %s200, %s214
      %p216 = scmp.eq.s32.totalorder %s38, 0
      %p217 = por %p215, %p216
      %s219 = sadd.s32 %s218, 1
      %p222 = scmp.eq.s32.totalorder %s32, 1
      %p223 = scmp.ne.s32.totalorder %s218, %s220
      %p224 = scmp.eq.s32.totalorder %s32, 0
      %p225 = por %p223, %p224
      %p226 = scmp.ne.s32.totalorder %s218, %s220
      %p227 = scmp.eq.s32.totalorder %s37, 1
      %p228 = por %p226, %p227
      %p229 = scmp.ne.s32.totalorder %s220, %s221
      %p230 = scmp.eq.s32.totalorder %s37, 0
      %p231 = por %p229, %p230
      %p232 = scmp.ne.s32.totalorder %s220, %s221
      %p233 = scmp.eq.s32.totalorder %s38, 1
      %p234 = por %p232, %p233
      %p236 = scmp.ne.s32.totalorder %s221, %s235
      %p237 = scmp.eq.s32.totalorder %s38, 0
      %p238 = por %p236, %p237
      %s240 = sadd.s32 %s239, 1
      %p243 = scmp.eq.s32.totalorder %s32, 1
      %p244 = scmp.ne.s32.totalorder %s239, %s241
      %p245 = scmp.eq.s32.totalorder %s32, 0
      %p246 = por %p244, %p245
      %p247 = scmp.ne.s32.totalorder %s239, %s241
      %p248 = scmp.eq.s32.totalorder %s37, 1
      %p249 = por %p247, %p248
      %p250 = scmp.ne.s32.totalorder %s241, %s242
      %p251 = scmp.eq.s32.totalorder %s37, 0
      %p252 = por %p250, %p251
      %p253 = scmp.ne.s32.totalorder %s241, %s242
      %p254 = scmp.eq.s32.totalorder %s38, 1
      %p255 = por %p253, %p254
      %p257 = scmp.ne.s32.totalorder %s242, %s256
      %p258 = scmp.eq.s32.totalorder %s38, 0
      %p259 = por %p257, %p258
      %s261 = sadd.s32 %s260, 1
      %p264 = scmp.eq.s32.totalorder %s32, 1
      %p265 = scmp.ne.s32.totalorder %s260, %s262
      %p266 = scmp.eq.s32.totalorder %s32, 0
      %p267 = por %p265, %p266
      %p268 = scmp.ne.s32.totalorder %s260, %s262
      %p269 = scmp.eq.s32.totalorder %s37, 1
      %p270 = por %p268, %p269
      %p271 = scmp.ne.s32.totalorder %s262, %s263
      %p272 = scmp.eq.s32.totalorder %s37, 0
      %p273 = por %p271, %p272
      %p274 = scmp.ne.s32.totalorder %s262, %s263
      %p275 = scmp.eq.s32.totalorder %s38, 1
      %p276 = por %p274, %p275
      %p278 = scmp.ne.s32.totalorder %s263, %s277
      %p279 = scmp.eq.s32.totalorder %s38, 0
      %p280 = por %p278, %p279
      %s282 = sadd.s32 %s281, 1
      %p285 = scmp.eq.s32.totalorder %s32, 1
      %p286 = scmp.ne.s32.totalorder %s281, %s283
      %p287 = scmp.eq.s32.totalorder %s32, 0
      %p288 = por %p286, %p287
      %p289 = scmp.ne.s32.totalorder %s281, %s283
      %p290 = scmp.eq.s32.totalorder %s37, 1
      %p291 = por %p289, %p290
      %p292 = scmp.ne.s32.totalorder %s283, %s284
      %p293 = scmp.eq.s32.totalorder %s37, 0
      %p294 = por %p292, %p293
      %p295 = scmp.ne.s32.totalorder %s283, %s284
      %p296 = scmp.eq.s32.totalorder %s38, 1
      %p297 = por %p295, %p296
      %p299 = scmp.ne.s32.totalorder %s284, %s298
      %p300 = scmp.eq.s32.totalorder %s38, 0
      %p301 = por %p299, %p300
      %s302 = ssub.s32 %s32, %s39
      %p303 = scmp.eq.s32.totalorder %s302, 0
      %s305 = sadd.s32 %s304, 1
      %s306 = scalar_select %p303, %s304, %s305
      %p309 = pneg %p303
      %p310 = scmp.eq.s32.totalorder %s32, 1
      %p311 = por %p309, %p310
      %p312 = scmp.ne.s32.totalorder %s304, %s307
      %p313 = scmp.eq.s32.totalorder %s32, 0
      %p314 = por %p312, %p313
      %p315 = scmp.ne.s32.totalorder %s304, %s307
      %p316 = scmp.eq.s32.totalorder %s37, 1
      %p317 = por %p315, %p316
      %p318 = scmp.ne.s32.totalorder %s307, %s308
      %p319 = scmp.eq.s32.totalorder %s37, 0
      %p320 = por %p318, %p319
      %p321 = scmp.ne.s32.totalorder %s307, %s308
      %p322 = scmp.eq.s32.totalorder %s38, 1
      %p323 = por %p321, %p322
      %p325 = scmp.ne.s32.totalorder %s308, %s324
      %p326 = scmp.eq.s32.totalorder %s38, 0
      %p327 = por %p325, %p326
      %p328 = scmp.le.s32.totalorder 1, %s32
      %p329 = scmp.lt.s32.totalorder %s32, 3
      %p330 = pnand %p328, %p329
      %p331 = pneg %p330
      // Predicated region
      $region9: #{tpu_custom_call.1} parent=5 // pred_check
        _
      $region10: #{tpu_custom_call.1} parent=5 // pred_check_branch
        %333 = sbr.rel (%p330) target = $region12
      $region11: #{tpu_custom_call.1} parent=5 // pred_region
        %s334 = ssub.s32 %s32, 1
        // Predicated region
        $region13: #{tpu_custom_call.1} parent=11 // pred_check
          %p335 = pneg %p105
        $region14: #{tpu_custom_call.1} parent=11 // pred_check_branch
          %337 = sbr.rel (%p335) target = $region16
        $region15: #{tpu_custom_call.1} parent=11 // pred_region
          %s339 = ssub.s32 256, 256
          %340 = vsyncadd [#allocation7], %s339
          %s341 = sshll.u32 [#allocation8], 4
          %s342 = int_to_ptr.vmem [resolvable:$true] %s341
          %347 = dma.hbm_to_vmem [thread:$0]  %s2, 256, %s342, [#allocation7], 64, 64, 4
        $region16: #{tpu_custom_call.1} parent=11 // pred_fallthru
          _
        // Predicated region
        $region17: #{tpu_custom_call.1} parent=11 // pred_check
          %p348 = pneg %p126
        $region18: #{tpu_custom_call.1} parent=11 // pred_check_branch
          %350 = sbr.rel (%p348) target = $region20
        $region19: #{tpu_custom_call.1} parent=11 // pred_region
          %s352 = ssub.s32 256, 256
          %353 = vsyncadd [#allocation10], %s352
          %s354 = sshll.u32 [#allocation9], 4
          %s355 = int_to_ptr.vmem [resolvable:$true] %s354
          %360 = dma.hbm_to_vmem [thread:$0]  %s3, 256, %s355, [#allocation10], 64, 64, 4
        $region20: #{tpu_custom_call.1} parent=11 // pred_fallthru
          _
        // Predicated region
        $region21: #{tpu_custom_call.1} parent=11 // pred_check
          %p361 = pneg %p147
        $region22: #{tpu_custom_call.1} parent=11 // pred_check_branch
          %363 = sbr.rel (%p361) target = $region24
        $region23: #{tpu_custom_call.1} parent=11 // pred_region
          %s365 = ssub.s32 256, 256
          %366 = vsyncadd [#allocation10], %s365
          %s367 = sshll.u32 [#allocation11], 4
          %s368 = int_to_ptr.vmem [resolvable:$true] %s367
          %373 = dma.hbm_to_vmem [thread:$0]  %s4, 256, %s368, [#allocation10], 64, 64, 4
        $region24: #{tpu_custom_call.1} parent=11 // pred_fallthru
          _
        // Predicated region
        $region25: #{tpu_custom_call.1} parent=11 // pred_check
          %p374 = pneg %p168
        $region26: #{tpu_custom_call.1} parent=11 // pred_check_branch
          %376 = sbr.rel (%p374) target = $region28
        $region27: #{tpu_custom_call.1} parent=11 // pred_region
          %s378 = ssub.s32 16, 16
          %379 = vsyncadd [#allocation13], %s378
          %s381 = sshll.u32 [#allocation12], 4
          %s382 = int_to_ptr.vmem [resolvable:$true] %s381
          %384 = dma.hbm_to_vmem [thread:$0]  %s5, 16, %s382, [#allocation13]
        $region28: #{tpu_custom_call.1} parent=11 // pred_fallthru
          _
        // Predicated region
        $region29: #{tpu_custom_call.1} parent=11 // pred_check
          %p385 = pneg %p189
        $region30: #{tpu_custom_call.1} parent=11 // pred_check_branch
          %387 = sbr.rel (%p385) target = $region32
        $region31: #{tpu_custom_call.1} parent=11 // pred_region
          %s389 = ssub.s32 1024, 1024
          %390 = vsyncadd [#allocation13], %s389
          %s391 = sshll.u32 [#allocation14], 4
          %s392 = int_to_ptr.vmem [resolvable:$true] %s391
          %397 = dma.hbm_to_vmem [thread:$0]  %s6, 1024, %s392, [#allocation13], 64, 64, 4
        $region32: #{tpu_custom_call.1} parent=11 // pred_fallthru
          _
        // Predicated region
        $region33: #{tpu_custom_call.1} parent=11 // pred_check
          %p398 = pneg %p210
        $region34: #{tpu_custom_call.1} parent=11 // pred_check_branch
          %400 = sbr.rel (%p398) target = $region36
        $region35: #{tpu_custom_call.1} parent=11 // pred_region
          %s402 = ssub.s32 16, 16
          %403 = vsyncadd [#allocation16], %s402
          %s405 = sshll.u32 [#allocation15], 4
          %s406 = int_to_ptr.vmem [resolvable:$true] %s405
          %408 = dma.hbm_to_vmem [thread:$0]  %s7, 16, %s406, [#allocation16]
        $region36: #{tpu_custom_call.1} parent=11 // pred_fallthru
          _
        // Predicated region
        $region37: #{tpu_custom_call.1} parent=11 // pred_check
          %p409 = pneg %p231
        $region38: #{tpu_custom_call.1} parent=11 // pred_check_branch
          %411 = sbr.rel (%p409) target = $region40
        $region39: #{tpu_custom_call.1} parent=11 // pred_region
          %s413 = ssub.s32 16, 16
          %414 = vsyncadd [#allocation16], %s413
          %s416 = sshll.u32 [#allocation17], 4
          %s417 = int_to_ptr.vmem [resolvable:$true] %s416
          %419 = dma.hbm_to_vmem [thread:$0]  %s8, 16, %s417, [#allocation16]
        $region40: #{tpu_custom_call.1} parent=11 // pred_fallthru
          _
        // Predicated region
        $region41: #{tpu_custom_call.1} parent=11 // pred_check
          %p420 = pneg %p252
        $region42: #{tpu_custom_call.1} parent=11 // pred_check_branch
          %422 = sbr.rel (%p420) target = $region44
        $region43: #{tpu_custom_call.1} parent=11 // pred_region
          %s424 = ssub.s32 16, 16
          %425 = vsyncadd [#allocation19], %s424
          %s427 = sshll.u32 [#allocation18], 4
          %s428 = int_to_ptr.vmem [resolvable:$true] %s427
          %430 = dma.hbm_to_vmem [thread:$0]  %s9, 16, %s428, [#allocation19]
        $region44: #{tpu_custom_call.1} parent=11 // pred_fallthru
          _
        // Predicated region
        $region45: #{tpu_custom_call.1} parent=11 // pred_check
          %p431 = pneg %p273
        $region46: #{tpu_custom_call.1} parent=11 // pred_check_branch
          %433 = sbr.rel (%p431) target = $region48
        $region47: #{tpu_custom_call.1} parent=11 // pred_region
          %s435 = ssub.s32 16, 16
          %436 = vsyncadd [#allocation19], %s435
          %s438 = sshll.u32 [#allocation20], 4
          %s439 = int_to_ptr.vmem [resolvable:$true] %s438
          %441 = dma.hbm_to_vmem [thread:$0]  %s10, 16, %s439, [#allocation19]
        $region48: #{tpu_custom_call.1} parent=11 // pred_fallthru
          _
        // Predicated region
        $region49: #{tpu_custom_call.1} parent=11 // pred_check
          %p442 = pneg %p294
        $region50: #{tpu_custom_call.1} parent=11 // pred_check_branch
          %444 = sbr.rel (%p442) target = $region52
        $region51: #{tpu_custom_call.1} parent=11 // pred_region
          %s446 = ssub.s32 16, 16
          %447 = vsyncadd [#allocation22], %s446
          %s449 = sshll.u32 [#allocation21], 4
          %s450 = int_to_ptr.vmem [resolvable:$true] %s449
          %452 = dma.hbm_to_vmem [thread:$0]  %s11, 16, %s450, [#allocation22]
        $region52: #{tpu_custom_call.1} parent=11 // pred_fallthru
          _
      $region12: #{tpu_custom_call.1} parent=5 // pred_fallthru
        _
      %p453 = scmp.lt.s32.totalorder %s32, 2
      // Predicated region
      $region53: #{tpu_custom_call.1} parent=5 // pred_check
        %p454 = pneg %p453
      $region54: #{tpu_custom_call.1} parent=5 // pred_check_branch
        %456 = sbr.rel (%p454) target = $region56
      $region55: #{tpu_custom_call.1} parent=5 // pred_region
        // Predicated region
        $region57: #{tpu_custom_call.1} parent=55 // pred_check
          %p457 = pneg %p52
        $region58: #{tpu_custom_call.1} parent=55 // pred_check_branch
          %459 = sbr.rel (%p457) target = $region60
        $region59: #{tpu_custom_call.1} parent=55 // pred_region
          %s460 = sand.u32 %s42, 1
          %s461 = scalar_lea.sflag [#allocation4], %s460
          %s462 = sand.u32 %s42, 1
          %s463 = smul.addr %s462, 8
          %s464 = scalar_lea.vmem [#allocation3], %s463
          %s466 = ssub.s32 128, 128
          %467 = vsyncadd %s461, %s466
          %s468 = smul.addr %s32, 128
          %s469 = scalar_lea.hbm %s0, %s468
          %s471 = sshll.u32 %s464, 4
          %s472 = int_to_ptr.vmem [resolvable:$true] %s471
          %474 = dma.hbm_to_vmem [thread:$0]  %s469, 128, %s472, %s461
        $region60: #{tpu_custom_call.1} parent=55 // pred_fallthru
          _
        // Predicated region
        $region61: #{tpu_custom_call.1} parent=55 // pred_check
          %p475 = pneg %p78
        $region62: #{tpu_custom_call.1} parent=55 // pred_check_branch
          %477 = sbr.rel (%p475) target = $region64
        $region63: #{tpu_custom_call.1} parent=55 // pred_region
          %s478 = sand.u32 %s32, 1
          %s479 = scalar_lea.sflag [#allocation7], %s478
          %s480 = sand.u32 %s68, 1
          %s481 = smul.addr %s480, 8
          %s482 = scalar_lea.vmem [#allocation6], %s481
          %s484 = ssub.s32 128, 128
          %485 = vsyncadd %s479, %s484
          %s486 = smul.addr %s32, 128
          %s487 = scalar_lea.hbm %s1, %s486
          %s489 = sshll.u32 %s482, 4
          %s490 = int_to_ptr.vmem [resolvable:$true] %s489
          %492 = dma.hbm_to_vmem [thread:$0]  %s487, 128, %s490, %s479
        $region64: #{tpu_custom_call.1} parent=55 // pred_fallthru
          _
      $region56: #{tpu_custom_call.1} parent=5 // pred_fallthru
        _
      %p493 = scmp.le.s32.totalorder 1, %s32
      %p494 = scmp.lt.s32.totalorder %s32, 3
      %p495 = pnand %p493, %p494
      %p496 = pneg %p495
      // Predicated region
      $region65: #{tpu_custom_call.1} parent=5 // pred_check
        _
      $region66: #{tpu_custom_call.1} parent=5 // pred_check_branch
        %498 = sbr.rel (%p495) target = $region68
      $region67: #{tpu_custom_call.1} parent=5 // pred_region
        %s499 = ssub.s32 %s32, 1
        %s500 = sand.u32 %s45, 1
        %s501 = scalar_lea.sflag [#allocation4], %s500
        %s502 = sand.u32 %s45, 1
        %s503 = smul.addr %s502, 8
        %s504 = scalar_lea.vmem [#allocation3], %s503
        // Predicated region
        $region69: #{tpu_custom_call.1} parent=67 // pred_check
          %p505 = pneg %p58
        $region70: #{tpu_custom_call.1} parent=67 // pred_check_branch
          %507 = sbr.rel (%p505) target = $region72
        $region71: #{tpu_custom_call.1} parent=67 // pred_region
          %508 = dma.done %s501, 128
        $region72: #{tpu_custom_call.1} parent=67 // pred_fallthru
          _
        %s509 = sand.u32 %s37, 1
        %s510 = scalar_lea.sflag [#allocation7], %s509
        %s511 = sand.u32 %s71, 1
        %s512 = smul.addr %s511, 8
        %s513 = scalar_lea.vmem [#allocation6], %s512
        // Predicated region
        $region73: #{tpu_custom_call.1} parent=67 // pred_check
          %p514 = pneg %p84
        $region74: #{tpu_custom_call.1} parent=67 // pred_check_branch
          %516 = sbr.rel (%p514) target = $region76
        $region75: #{tpu_custom_call.1} parent=67 // pred_region
          %517 = dma.done %s510, 128
        $region76: #{tpu_custom_call.1} parent=67 // pred_fallthru
          _
        // Predicated region
        $region77: #{tpu_custom_call.1} parent=67 // pred_check
          %p518 = pneg %p105
        $region78: #{tpu_custom_call.1} parent=67 // pred_check_branch
          %520 = sbr.rel (%p518) target = $region80
        $region79: #{tpu_custom_call.1} parent=67 // pred_region
          %521 = dma.done [#allocation7], 256
        $region80: #{tpu_custom_call.1} parent=67 // pred_fallthru
          _
        // Predicated region
        $region81: #{tpu_custom_call.1} parent=67 // pred_check
          %p522 = pneg %p126
        $region82: #{tpu_custom_call.1} parent=67 // pred_check_branch
          %524 = sbr.rel (%p522) target = $region84
        $region83: #{tpu_custom_call.1} parent=67 // pred_region
          %525 = dma.done [#allocation10], 256
        $region84: #{tpu_custom_call.1} parent=67 // pred_fallthru
          _
        // Predicated region
        $region85: #{tpu_custom_call.1} parent=67 // pred_check
          %p526 = pneg %p147
        $region86: #{tpu_custom_call.1} parent=67 // pred_check_branch
          %528 = sbr.rel (%p526) target = $region88
        $region87: #{tpu_custom_call.1} parent=67 // pred_region
          %529 = dma.done [#allocation10], 256
        $region88: #{tpu_custom_call.1} parent=67 // pred_fallthru
          _
        // Predicated region
        $region89: #{tpu_custom_call.1} parent=67 // pred_check
          %p530 = pneg %p168
        $region90: #{tpu_custom_call.1} parent=67 // pred_check_branch
          %532 = sbr.rel (%p530) target = $region92
        $region91: #{tpu_custom_call.1} parent=67 // pred_region
          %533 = dma.done [#allocation13], 16
        $region92: #{tpu_custom_call.1} parent=67 // pred_fallthru
          _
        // Predicated region
        $region93: #{tpu_custom_call.1} parent=67 // pred_check
          %p534 = pneg %p189
        $region94: #{tpu_custom_call.1} parent=67 // pred_check_branch
          %536 = sbr.rel (%p534) target = $region96
        $region95: #{tpu_custom_call.1} parent=67 // pred_region
          %537 = dma.done [#allocation13], 1024
        $region96: #{tpu_custom_call.1} parent=67 // pred_fallthru
          _
        // Predicated region
        $region97: #{tpu_custom_call.1} parent=67 // pred_check
          %p538 = pneg %p210
        $region98: #{tpu_custom_call.1} parent=67 // pred_check_branch
          %540 = sbr.rel (%p538) target = $region100
        $region99: #{tpu_custom_call.1} parent=67 // pred_region
          %541 = dma.done [#allocation16], 16
        $region100: #{tpu_custom_call.1} parent=67 // pred_fallthru
          _
        // Predicated region
        $region101: #{tpu_custom_call.1} parent=67 // pred_check
          %p542 = pneg %p231
        $region102: #{tpu_custom_call.1} parent=67 // pred_check_branch
          %544 = sbr.rel (%p542) target = $region104
        $region103: #{tpu_custom_call.1} parent=67 // pred_region
          %545 = dma.done [#allocation16], 16
        $region104: #{tpu_custom_call.1} parent=67 // pred_fallthru
          _
        // Predicated region
        $region105: #{tpu_custom_call.1} parent=67 // pred_check
          %p546 = pneg %p252
        $region106: #{tpu_custom_call.1} parent=67 // pred_check_branch
          %548 = sbr.rel (%p546) target = $region108
        $region107: #{tpu_custom_call.1} parent=67 // pred_region
          %549 = dma.done [#allocation19], 16
        $region108: #{tpu_custom_call.1} parent=67 // pred_fallthru
          _
        // Predicated region
        $region109: #{tpu_custom_call.1} parent=67 // pred_check
          %p550 = pneg %p273
        $region110: #{tpu_custom_call.1} parent=67 // pred_check_branch
          %552 = sbr.rel (%p550) target = $region112
        $region111: #{tpu_custom_call.1} parent=67 // pred_region
          %553 = dma.done [#allocation19], 16
        $region112: #{tpu_custom_call.1} parent=67 // pred_fallthru
          _
        // Predicated region
        $region113: #{tpu_custom_call.1} parent=67 // pred_check
          %p554 = pneg %p294
        $region114: #{tpu_custom_call.1} parent=67 // pred_check_branch
          %556 = sbr.rel (%p554) target = $region116
        $region115: #{tpu_custom_call.1} parent=67 // pred_region
          %557 = dma.done [#allocation22], 16
        $region116: #{tpu_custom_call.1} parent=67 // pred_fallthru
          _
        %s558 = sand.u32 %s45, 1
        %s559 = scalar_lea.sflag [#allocation4], %s558
        %s560 = sand.u32 %s45, 1
        %s561 = smul.addr %s560, 8
        %s562 = scalar_lea.vmem [#allocation3], %s561
        %p563 = pneg %p58
        %p564 = pneg %p55
        %s565 = sand.u32 %s37, 1
        %s566 = scalar_lea.sflag [#allocation7], %s565
        %s567 = sand.u32 %s71, 1
        %s568 = smul.addr %s567, 8
        %s569 = scalar_lea.vmem [#allocation6], %s568
        %p570 = pneg %p84
        %p571 = pneg %p81
        %p572 = pneg %p105
        %p573 = pneg %p102
        %p574 = pneg %p126
        %p575 = pneg %p123
        %p576 = pneg %p147
        %p577 = pneg %p144
        %p578 = pneg %p168
        %p579 = pneg %p165
        %p580 = pneg %p189
        %p581 = pneg %p186
        %p582 = pneg %p210
        %p583 = pneg %p207
        %p584 = pneg %p231
        %p585 = pneg %p228
        %p586 = pneg %p252
        %p587 = pneg %p249
        %p588 = pneg %p273
        %p589 = pneg %p270
        %p590 = pneg %p294
        %p591 = pneg %p291
        %p592 = pneg %p320
        %p593 = pneg %p317
        %s594 = sand.u32 %s307, 1
        %s595 = scalar_lea.sflag [#allocation5], %s594
        %s596 = sand.u32 %s307, 1
        %s597 = smul.addr %s596, 8
        %s598 = scalar_lea.vmem [#allocation23], %s597
        %v600 = vld [vmem:[%s504] sm:$0xff]
        %v601 = vld [vmem:[%s513] sm:$0xff]
        %v602 = vcvt.s32.f32 %v601
        %vm603 = vcmp.eq.f32.partialorder %v602, 0.0
        %v604 = vsel %vm603, -1e+09, 0.0
        %v605 = vld [vmem:[#allocation17] sm:$0x1]
        %v606 = vld [vmem:[#allocation18] sm:$0x1]
        %vm607 = vcmask 261120
        %v608 = vsel %vm607, %v600, 0.0
        %609 = vadd.xlane.f32.xlu0 %v608
        %v610 = vpop.xlane.xlu0 %609
        %v611 = vrcp.pop 32.0
        %v612 = vmul.f32 %v610, %v611
        %v613 = vsub.f32 %v600, %v612
        %v614 = vmul.f32 %v613, %v613
        %v615 = vsel %vm607, %v614, 0.0
        %616 = vadd.xlane.f32.xlu0 %v615
        %v617 = vpop.xlane.xlu0 %616
        %v618 = vmul.f32 %v617, %v611
        %v619 = vadd.f32 %v618, 1e-05
        %v620 = vrsqrt.pop %v619
        %v621 = vmul.f32 %v613, %v620
        %v623 = vlaneseq
        %v624 = vshrl.u32 %v623, 7
        %v625 = vsub.s32 0, %v624
        %v626 = vrot.slane %v605, %v625
        %v628 = vmul.f32 %v621, %v626
        %v630 = vlaneseq
        %v631 = vshrl.u32 %v630, 7
        %v632 = vsub.s32 0, %v631
        %v633 = vrot.slane %v606, %v632
        %v635 = vadd.f32 %v628, %v633
        %v636 = vpack.c.bf16 %v635, %v635
        %v637 = vld [vmem:[#allocation8] sm:$0xf]
        %v638 = vld [vmem:[#allocation8 + $0x4] sm:$0xf]
        %v639 = vld [vmem:[#allocation8 + $0x8] sm:$0xf]
        %v640 = vld [vmem:[#allocation8 + $0xc] sm:$0xf]
        %v645 = vunpack.c.l.b16 %v637
        %v646 = vunpack.c.l.b16 %v638
        %v647 = vunpack.c.l.b16 %v639
        %v648 = vunpack.c.l.b16 %v640
        %v649 = vpack.c.b16 %v646, %v645
        %v650 = vpack.c.b16 %v648, %v647
        %v654 = vsel %vm607, %v636, 0
        %656 = vmatprep.subr.bf16.mxu0 0
        %657 = vmatpush1.bf16.msra.mxu0 %v649
        %658 = vmatprep.subr.bf16.mxu0 0
        %659 = vmatpush1.bf16.msra.mxu0 %v650
        %660 = vmatprep.subr.bf16.mxu0 0
        %661 = vmatpush1.bf16.msra.mxu0 0
        %662 = vmatprep.subr.bf16.mxu0 0
        %663 = vmatpush1.bf16.msra.mxu0 0
        %664 = vmatprep.subr.bf16.mxu0 0
        %665 = vmatpush1.bf16.msra.mxu0 0
        %666 = vmatprep.subr.bf16.mxu0 0
        %667 = vmatpush1.bf16.msra.mxu0 0
        %668 = vmatprep.subr.bf16.mxu0 0
        %669 = vmatpush1.bf16.msra.mxu0 0
        %670 = vmatprep.subr.bf16.mxu0 0
        %671 = vmatpush1.bf16.msra.mxu0 0
        %672 = vmatprep.subr.bf16.mxu0 0
        %673 = vmatpush1.bf16.msra.mxu0 0
        %674 = vmatprep.subr.bf16.mxu0 0
        %675 = vmatpush1.bf16.msra.mxu0 0
        %676 = vmatprep.subr.bf16.mxu0 0
        %677 = vmatpush1.bf16.msra.mxu0 0
        %678 = vmatprep.subr.bf16.mxu0 0
        %679 = vmatpush1.bf16.msra.mxu0 0
        %680 = vmatprep.subr.bf16.mxu0 0
        %681 = vmatpush1.bf16.msra.mxu0 0
        %682 = vmatprep.subr.bf16.mxu0 0
        %683 = vmatpush1.bf16.msra.mxu0 0
        %684 = vmatprep.subr.bf16.mxu0 0
        %685 = vmatpush1.bf16.msra.mxu0 0
        %686 = vmatprep.subr.bf16.mxu0 0
        %687 = vmatpush1.bf16.msra.mxu0 0
        %688 = vmatprep.mubr.bf16.mxu0 0
        %689 = vmatmul.mubr.bf16.gmra.mrb[0].mxu0 %v654
        %v690 = vpop.f32.mrb[0].mxu0
        %v691 = vadd.f32 0.0, %v690
        %v692 = vpop.f32.mrb[0].mxu0
        %v693 = vpop.f32.mrb[0].mxu0
        %v694 = vpop.f32.mrb[0].mxu0
        %695 = vdwg.mxu0
        %v696 = vmul.f32 %v691, 0.35355338
        %v697 = vpack.c.bf16 %v696, %v696
        %699 = vrot.lane.b32.xlu0 %v691, 96
        %v700 = vpop.permute.xlu0 %699
        %702 = vxpose.xlu0.b32.start [1/16] %v700, 128
        %703 = vxpose.xlu0.b32.cont [2/16] 0.0, 128
        %704 = vxpose.xlu0.b32.cont [3/16] 0.0, 128
        %705 = vxpose.xlu0.b32.cont [4/16] 0.0, 128
        %706 = vxpose.xlu0.b32.cont [5/16] 0.0, 128
        %707 = vxpose.xlu0.b32.cont [6/16] 0.0, 128
        %708 = vxpose.xlu0.b32.cont [7/16] 0.0, 128
        %709 = vxpose.xlu0.b32.cont [8/16] 0.0, 128
        %710 = vxpose.xlu0.b32.cont [9/16] 0.0, 128
        %711 = vxpose.xlu0.b32.cont [10/16] 0.0, 128
        %712 = vxpose.xlu0.b32.cont [11/16] 0.0, 128
        %713 = vxpose.xlu0.b32.cont [12/16] 0.0, 128
        %714 = vxpose.xlu0.b32.cont [13/16] 0.0, 128
        %715 = vxpose.xlu0.b32.cont [14/16] 0.0, 128
        %716 = vxpose.xlu0.b32.cont [15/16] 0.0, 128
        %717 = vxpose.xlu0.b32.end [16/16] 0.0, 128
        %v718 = vpop.trf.xlu0
        %v719 = vpop.trf.xlu0
        %v720 = vpop.trf.xlu0
        %v721 = vpop.trf.xlu0
        %v722 = vpop.trf.xlu0
        %v723 = vpop.trf.xlu0
        %v724 = vpop.trf.xlu0
        %v725 = vpop.trf.xlu0
        %v726 = vpop.trf.xlu0
        %v727 = vpop.trf.xlu0
        %v728 = vpop.trf.xlu0
        %v729 = vpop.trf.xlu0
        %v730 = vpop.trf.xlu0
        %v731 = vpop.trf.xlu0
        %v732 = vpop.trf.xlu0
        %v733 = vpop.trf.xlu0
        %v734 = vpack.c.bf16 %v719, %v718
        %v735 = vpack.c.bf16 %v721, %v720
        %v736 = vpack.c.bf16 %v691, %v691
        %vm737 = vcmask 64512
        %v739 = vsel %vm737, %v697, 0
        %vm741 = vcmask 1043456
        %v743 = vsel %vm741, %v734, 0
        %745 = vmatprep.subr.bf16.mxu0 0
        %746 = vmatpush1.bf16.msra.mxu0 %v743
        %747 = vmatprep.subr.bf16.mxu0 0
        %748 = vmatpush1.bf16.msra.mxu0 0
        %749 = vmatprep.subr.bf16.mxu0 0
        %750 = vmatpush1.bf16.msra.mxu0 0
        %751 = vmatprep.subr.bf16.mxu0 0
        %752 = vmatpush1.bf16.msra.mxu0 0
        %753 = vmatprep.subr.bf16.mxu0 0
        %754 = vmatpush1.bf16.msra.mxu0 0
        %755 = vmatprep.subr.bf16.mxu0 0
        %756 = vmatpush1.bf16.msra.mxu0 0
        %757 = vmatprep.subr.bf16.mxu0 0
        %758 = vmatpush1.bf16.msra.mxu0 0
        %759 = vmatprep.subr.bf16.mxu0 0
        %760 = vmatpush1.bf16.msra.mxu0 0
        %761 = vmatprep.subr.bf16.mxu0 0
        %762 = vmatpush1.bf16.msra.mxu0 0
        %763 = vmatprep.subr.bf16.mxu0 0
        %764 = vmatpush1.bf16.msra.mxu0 0
        %765 = vmatprep.subr.bf16.mxu0 0
        %766 = vmatpush1.bf16.msra.mxu0 0
        %767 = vmatprep.subr.bf16.mxu0 0
        %768 = vmatpush1.bf16.msra.mxu0 0
        %769 = vmatprep.subr.bf16.mxu0 0
        %770 = vmatpush1.bf16.msra.mxu0 0
        %771 = vmatprep.subr.bf16.mxu0 0
        %772 = vmatpush1.bf16.msra.mxu0 0
        %773 = vmatprep.subr.bf16.mxu0 0
        %774 = vmatpush1.bf16.msra.mxu0 0
        %775 = vmatprep.subr.bf16.mxu0 0
        %776 = vmatpush1.bf16.msra.mxu0 0
        %777 = vmatprep.mubr.bf16.mxu0 0
        %778 = vmatmul.mubr.bf16.gmra.mrb[0].mxu0 %v739
        %v779 = vpop.f32.mrb[0].mxu0
        %v780 = vadd.f32 %v604, %v779
        %v781 = vpop.f32.mrb[0].mxu0
        %v782 = vpop.f32.mrb[0].mxu0
        %v783 = vpop.f32.mrb[0].mxu0
        %784 = vdwg.mxu0
        %v785 = vsel %vm737, %v780, -inf
        %786 = vmax.xlane.f32.xlu0 %v785
        %v787 = vpop.xlane.xlu0 %786
        %v788 = vsub.f32 %v780, %v787
        %v789 = vmul.f32 %v788, 1.442695
        %v790 = vpow.pop %v789
        %v791 = vsel %vm737, %v790, 0.0
        %792 = vadd.xlane.f32.xlu0 %v791
        %v793 = vpop.xlane.xlu0 %792
        %v794 = vrcp.pop %v793
        %v795 = vmul.f32 %v790, %v794
        %v796 = vsel %vm603, 0.0, %v795
        %v797 = vpack.c.bf16 %v796, %v796
        %799 = vrot.lane.b32.xlu0 %v736, 64
        %v800 = vpop.permute.xlu0 %799
        %v802 = vsel %vm737, %v797, 0
        %v805 = vsel %vm741, %v800, 0
        %807 = vmatprep.subr.bf16.mxu0 0
        %808 = vmatpush1.bf16.msra.mxu0 %v805
        %809 = vmatprep.subr.bf16.mxu0 0
        %810 = vmatpush1.bf16.msra.mxu0 0
        %811 = vmatprep.subr.bf16.mxu0 0
        %812 = vmatpush1.bf16.msra.mxu0 0
        %813 = vmatprep.subr.bf16.mxu0 0
        %814 = vmatpush1.bf16.msra.mxu0 0
        %815 = vmatprep.subr.bf16.mxu0 0
        %816 = vmatpush1.bf16.msra.mxu0 0
        %817 = vmatprep.subr.bf16.mxu0 0
        %818 = vmatpush1.bf16.msra.mxu0 0
        %819 = vmatprep.subr.bf16.mxu0 0
        %820 = vmatpush1.bf16.msra.mxu0 0
        %821 = vmatprep.subr.bf16.mxu0 0
        %822 = vmatpush1.bf16.msra.mxu0 0
        %823 = vmatprep.subr.bf16.mxu0 0
        %824 = vmatpush1.bf16.msra.mxu0 0
        %825 = vmatprep.subr.bf16.mxu0 0
        %826 = vmatpush1.bf16.msra.mxu0 0
        %827 = vmatprep.subr.bf16.mxu0 0
        %828 = vmatpush1.bf16.msra.mxu0 0
        %829 = vmatprep.subr.bf16.mxu0 0
        %830 = vmatpush1.bf16.msra.mxu0 0
        %831 = vmatprep.subr.bf16.mxu0 0
        %832 = vmatpush1.bf16.msra.mxu0 0
        %833 = vmatprep.subr.bf16.mxu0 0
        %834 = vmatpush1.bf16.msra.mxu0 0
        %835 = vmatprep.subr.bf16.mxu0 0
        %836 = vmatpush1.bf16.msra.mxu0 0
        %837 = vmatprep.subr.bf16.mxu0 0
        %838 = vmatpush1.bf16.msra.mxu0 0
        %839 = vmatprep.mubr.bf16.mxu0 0
        %840 = vmatmul.mubr.bf16.gmra.mrb[0].mxu0 %v802
        %v841 = vpop.f32.mrb[0].mxu0
        %v842 = vadd.f32 0.0, %v841
        %v843 = vpop.f32.mrb[0].mxu0
        %v844 = vpop.f32.mrb[0].mxu0
        %v845 = vpop.f32.mrb[0].mxu0
        %846 = vdwg.mxu0
        %847 = vst.msk [vmem:[#allocation2] sm:$0xff] %vm737, %v842
        %849 = vrot.lane.b32.xlu0 %v697, 120
        %v850 = vpop.permute.xlu0 %849
        %v852 = vrot.slane %v734, 4
        %v854 = vsel %vm737, %v850, 0
        %v857 = vsel %vm741, %v852, 0
        %859 = vmatprep.subr.bf16.mxu0 0
        %860 = vmatpush1.bf16.msra.mxu0 %v857
        %861 = vmatprep.subr.bf16.mxu0 0
        %862 = vmatpush1.bf16.msra.mxu0 0
        %863 = vmatprep.subr.bf16.mxu0 0
        %864 = vmatpush1.bf16.msra.mxu0 0
        %865 = vmatprep.subr.bf16.mxu0 0
        %866 = vmatpush1.bf16.msra.mxu0 0
        %867 = vmatprep.subr.bf16.mxu0 0
        %868 = vmatpush1.bf16.msra.mxu0 0
        %869 = vmatprep.subr.bf16.mxu0 0
        %870 = vmatpush1.bf16.msra.mxu0 0
        %871 = vmatprep.subr.bf16.mxu0 0
        %872 = vmatpush1.bf16.msra.mxu0 0
        %873 = vmatprep.subr.bf16.mxu0 0
        %874 = vmatpush1.bf16.msra.mxu0 0
        %875 = vmatprep.subr.bf16.mxu0 0
        %876 = vmatpush1.bf16.msra.mxu0 0
        %877 = vmatprep.subr.bf16.mxu0 0
        %878 = vmatpush1.bf16.msra.mxu0 0
        %879 = vmatprep.subr.bf16.mxu0 0
        %880 = vmatpush1.bf16.msra.mxu0 0
        %881 = vmatprep.subr.bf16.mxu0 0
        %882 = vmatpush1.bf16.msra.mxu0 0
        %883 = vmatprep.subr.bf16.mxu0 0
        %884 = vmatpush1.bf16.msra.mxu0 0
        %885 = vmatprep.subr.bf16.mxu0 0
        %886 = vmatpush1.bf16.msra.mxu0 0
        %887 = vmatprep.subr.bf16.mxu0 0
        %888 = vmatpush1.bf16.msra.mxu0 0
        %889 = vmatprep.subr.bf16.mxu0 0
        %890 = vmatpush1.bf16.msra.mxu0 0
        %891 = vmatprep.mubr.bf16.mxu0 0
        %892 = vmatmul.mubr.bf16.gmra.mrb[0].mxu0 %v854
        %v893 = vpop.f32.mrb[0].mxu0
        %v894 = vadd.f32 %v604, %v893
        %v895 = vpop.f32.mrb[0].mxu0
        %v896 = vpop.f32.mrb[0].mxu0
        %v897 = vpop.f32.mrb[0].mxu0
        %898 = vdwg.mxu0
        %v899 = vsel %vm737, %v894, -inf
        %900 = vmax.xlane.f32.xlu0 %v899
        %v901 = vpop.xlane.xlu0 %900
        %v902 = vsub.f32 %v894, %v901
        %v903 = vmul.f32 %v902, 1.442695
        %v904 = vpow.pop %v903
        %v905 = vsel %vm737, %v904, 0.0
        %906 = vadd.xlane.f32.xlu0 %v905
        %v907 = vpop.xlane.xlu0 %906
        %v908 = vrcp.pop %v907
        %v909 = vmul.f32 %v904, %v908
        %v910 = vsel %vm603, 0.0, %v909
        %v911 = vpack.c.bf16 %v910, %v910
        %912 = vrot.lane.b32.xlu0 %v736, 56
        %v913 = vpop.permute.xlu0 %912
        %v915 = vsel %vm737, %v911, 0
        %v918 = vsel %vm741, %v913, 0
        %920 = vmatprep.subr.bf16.mxu0 0
        %921 = vmatpush1.bf16.msra.mxu0 %v918
        %922 = vmatprep.subr.bf16.mxu0 0
        %923 = vmatpush1.bf16.msra.mxu0 0
        %924 = vmatprep.subr.bf16.mxu0 0
        %925 = vmatpush1.bf16.msra.mxu0 0
        %926 = vmatprep.subr.bf16.mxu0 0
        %927 = vmatpush1.bf16.msra.mxu0 0
        %928 = vmatprep.subr.bf16.mxu0 0
        %929 = vmatpush1.bf16.msra.mxu0 0
        %930 = vmatprep.subr.bf16.mxu0 0
        %931 = vmatpush1.bf16.msra.mxu0 0
        %932 = vmatprep.subr.bf16.mxu0 0
        %933 = vmatpush1.bf16.msra.mxu0 0
        %934 = vmatprep.subr.bf16.mxu0 0
        %935 = vmatpush1.bf16.msra.mxu0 0
        %936 = vmatprep.subr.bf16.mxu0 0
        %937 = vmatpush1.bf16.msra.mxu0 0
        %938 = vmatprep.subr.bf16.mxu0 0
        %939 = vmatpush1.bf16.msra.mxu0 0
        %940 = vmatprep.subr.bf16.mxu0 0
        %941 = vmatpush1.bf16.msra.mxu0 0
        %942 = vmatprep.subr.bf16.mxu0 0
        %943 = vmatpush1.bf16.msra.mxu0 0
        %944 = vmatprep.subr.bf16.mxu0 0
        %945 = vmatpush1.bf16.msra.mxu0 0
        %946 = vmatprep.subr.bf16.mxu0 0
        %947 = vmatpush1.bf16.msra.mxu0 0
        %948 = vmatprep.subr.bf16.mxu0 0
        %949 = vmatpush1.bf16.msra.mxu0 0
        %950 = vmatprep.subr.bf16.mxu0 0
        %951 = vmatpush1.bf16.msra.mxu0 0
        %952 = vmatprep.mubr.bf16.mxu0 0
        %953 = vmatmul.mubr.bf16.gmra.mrb[0].mxu0 %v915
        %v954 = vpop.f32.mrb[0].mxu0
        %v955 = vadd.f32 0.0, %v954
        %v956 = vpop.f32.mrb[0].mxu0
        %v957 = vpop.f32.mrb[0].mxu0
        %v958 = vpop.f32.mrb[0].mxu0
        %959 = vdwg.mxu0
        %961 = vrot.lane.b32.xlu0 %v955, 8
        %v962 = vpop.permute.xlu0 %961
        %vm964 = vcmask 130112
        %965 = vst.msk [vmem:[#allocation2] sm:$0xff] %vm964, %v962
        %966 = vrot.lane.b32.xlu0 %v697, 112
        %v967 = vpop.permute.xlu0 %966
        %v969 = vsel %vm737, %v967, 0
        %v972 = vsel %vm741, %v735, 0
        %974 = vmatprep.subr.bf16.mxu0 0
        %975 = vmatpush1.bf16.msra.mxu0 %v972
        %976 = vmatprep.subr.bf16.mxu0 0
        %977 = vmatpush1.bf16.msra.mxu0 0
        %978 = vmatprep.subr.bf16.mxu0 0
        %979 = vmatpush1.bf16.msra.mxu0 0
        %980 = vmatprep.subr.bf16.mxu0 0
        %981 = vmatpush1.bf16.msra.mxu0 0
        %982 = vmatprep.subr.bf16.mxu0 0
        %983 = vmatpush1.bf16.msra.mxu0 0
        %984 = vmatprep.subr.bf16.mxu0 0
        %985 = vmatpush1.bf16.msra.mxu0 0
        %986 = vmatprep.subr.bf16.mxu0 0
        %987 = vmatpush1.bf16.msra.mxu0 0
        %988 = vmatprep.subr.bf16.mxu0 0
        %989 = vmatpush1.bf16.msra.mxu0 0
        %990 = vmatprep.subr.bf16.mxu0 0
        %991 = vmatpush1.bf16.msra.mxu0 0
        %992 = vmatprep.subr.bf16.mxu0 0
        %993 = vmatpush1.bf16.msra.mxu0 0
        %994 = vmatprep.subr.bf16.mxu0 0
        %995 = vmatpush1.bf16.msra.mxu0 0
        %996 = vmatprep.subr.bf16.mxu0 0
        %997 = vmatpush1.bf16.msra.mxu0 0
        %998 = vmatprep.subr.bf16.mxu0 0
        %999 = vmatpush1.bf16.msra.mxu0 0
        %1000 = vmatprep.subr.bf16.mxu0 0
        %1001 = vmatpush1.bf16.msra.mxu0 0
        %1002 = vmatprep.subr.bf16.mxu0 0
        %1003 = vmatpush1.bf16.msra.mxu0 0
        %1004 = vmatprep.subr.bf16.mxu0 0
        %1005 = vmatpush1.bf16.msra.mxu0 0
        %1006 = vmatprep.mubr.bf16.mxu0 0
        %1007 = vmatmul.mubr.bf16.gmra.mrb[0].mxu0 %v969
        %v1008 = vpop.f32.mrb[0].mxu0
        %v1009 = vadd.f32 %v604, %v1008
        %v1010 = vpop.f32.mrb[0].mxu0
        %v1011 = vpop.f32.mrb[0].mxu0
        %v1012 = vpop.f32.mrb[0].mxu0
        %1013 = vdwg.mxu0
        %v1014 = vsel %vm737, %v1009, -inf
        %1015 = vmax.xlane.f32.xlu0 %v1014
        %v1016 = vpop.xlane.xlu0 %1015
        %v1017 = vsub.f32 %v1009, %v1016
        %v1018 = vmul.f32 %v1017, 1.442695
        %v1019 = vpow.pop %v1018
        %v1020 = vsel %vm737, %v1019, 0.0
        %1021 = vadd.xlane.f32.xlu0 %v1020
        %v1022 = vpop.xlane.xlu0 %1021
        %v1023 = vrcp.pop %v1022
        %v1024 = vmul.f32 %v1019, %v1023
        %v1025 = vsel %vm603, 0.0, %v1024
        %v1026 = vpack.c.bf16 %v1025, %v1025
        %1027 = vrot.lane.b32.xlu0 %v736, 48
        %v1028 = vpop.permute.xlu0 %1027
        %v1030 = vsel %vm737, %v1026, 0
        %v1033 = vsel %vm741, %v1028, 0
        %1035 = vmatprep.subr.bf16.mxu0 0
        %1036 = vmatpush1.bf16.msra.mxu0 %v1033
        %1037 = vmatprep.subr.bf16.mxu0 0
        %1038 = vmatpush1.bf16.msra.mxu0 0
        %1039 = vmatprep.subr.bf16.mxu0 0
        %1040 = vmatpush1.bf16.msra.mxu0 0
        %1041 = vmatprep.subr.bf16.mxu0 0
        %1042 = vmatpush1.bf16.msra.mxu0 0
        %1043 = vmatprep.subr.bf16.mxu0 0
        %1044 = vmatpush1.bf16.msra.mxu0 0
        %1045 = vmatprep.subr.bf16.mxu0 0
        %1046 = vmatpush1.bf16.msra.mxu0 0
        %1047 = vmatprep.subr.bf16.mxu0 0
        %1048 = vmatpush1.bf16.msra.mxu0 0
        %1049 = vmatprep.subr.bf16.mxu0 0
        %1050 = vmatpush1.bf16.msra.mxu0 0
        %1051 = vmatprep.subr.bf16.mxu0 0
        %1052 = vmatpush1.bf16.msra.mxu0 0
        %1053 = vmatprep.subr.bf16.mxu0 0
        %1054 = vmatpush1.bf16.msra.mxu0 0
        %1055 = vmatprep.subr.bf16.mxu0 0
        %1056 = vmatpush1.bf16.msra.mxu0 0
        %1057 = vmatprep.subr.bf16.mxu0 0
        %1058 = vmatpush1.bf16.msra.mxu0 0
        %1059 = vmatprep.subr.bf16.mxu0 0
        %1060 = vmatpush1.bf16.msra.mxu0 0
        %1061 = vmatprep.subr.bf16.mxu0 0
        %1062 = vmatpush1.bf16.msra.mxu0 0
        %1063 = vmatprep.subr.bf16.mxu0 0
        %1064 = vmatpush1.bf16.msra.mxu0 0
        %1065 = vmatprep.subr.bf16.mxu0 0
        %1066 = vmatpush1.bf16.msra.mxu0 0
        %1067 = vmatprep.mubr.bf16.mxu0 0
        %1068 = vmatmul.mubr.bf16.gmra.mrb[0].mxu0 %v1030
        %v1069 = vpop.f32.mrb[0].mxu0
        %v1070 = vadd.f32 0.0, %v1069
        %v1071 = vpop.f32.mrb[0].mxu0
        %v1072 = vpop.f32.mrb[0].mxu0
        %v1073 = vpop.f32.mrb[0].mxu0
        %1074 = vdwg.mxu0
        %1076 = vrot.lane.b32.xlu0 %v1070, 16
        %v1077 = vpop.permute.xlu0 %1076
        %vm1079 = vcmask 195712
        %1080 = vst.msk [vmem:[#allocation2] sm:$0xff] %vm1079, %v1077
        %1081 = vrot.lane.b32.xlu0 %v697, 104
        %v1082 = vpop.permute.xlu0 %1081
        %v1084 = vrot.slane %v735, 4
        %v1086 = vsel %vm737, %v1082, 0
        %v1089 = vsel %vm741, %v1084, 0
        %1091 = vmatprep.subr.bf16.mxu0 0
        %1092 = vmatpush1.bf16.msra.mxu0 %v1089
        %1093 = vmatprep.subr.bf16.mxu0 0
        %1094 = vmatpush1.bf16.msra.mxu0 0
        %1095 = vmatprep.subr.bf16.mxu0 0
        %1096 = vmatpush1.bf16.msra.mxu0 0
        %1097 = vmatprep.subr.bf16.mxu0 0
        %1098 = vmatpush1.bf16.msra.mxu0 0
        %1099 = vmatprep.subr.bf16.mxu0 0
        %1100 = vmatpush1.bf16.msra.mxu0 0
        %1101 = vmatprep.subr.bf16.mxu0 0
        %1102 = vmatpush1.bf16.msra.mxu0 0
        %1103 = vmatprep.subr.bf16.mxu0 0
        %1104 = vmatpush1.bf16.msra.mxu0 0
        %1105 = vmatprep.subr.bf16.mxu0 0
        %1106 = vmatpush1.bf16.msra.mxu0 0
        %1107 = vmatprep.subr.bf16.mxu0 0
        %1108 = vmatpush1.bf16.msra.mxu0 0
        %1109 = vmatprep.subr.bf16.mxu0 0
        %1110 = vmatpush1.bf16.msra.mxu0 0
        %1111 = vmatprep.subr.bf16.mxu0 0
        %1112 = vmatpush1.bf16.msra.mxu0 0
        %1113 = vmatprep.subr.bf16.mxu0 0
        %1114 = vmatpush1.bf16.msra.mxu0 0
        %1115 = vmatprep.subr.bf16.mxu0 0
        %1116 = vmatpush1.bf16.msra.mxu0 0
        %1117 = vmatprep.subr.bf16.mxu0 0
        %1118 = vmatpush1.bf16.msra.mxu0 0
        %1119 = vmatprep.subr.bf16.mxu0 0
        %1120 = vmatpush1.bf16.msra.mxu0 0
        %1121 = vmatprep.subr.bf16.mxu0 0
        %1122 = vmatpush1.bf16.msra.mxu0 0
        %1123 = vmatprep.mubr.bf16.mxu0 0
        %1124 = vmatmul.mubr.bf16.gmra.mrb[0].mxu0 %v1086
        %v1125 = vpop.f32.mrb[0].mxu0
        %v1126 = vadd.f32 %v604, %v1125
        %v1127 = vpop.f32.mrb[0].mxu0
        %v1128 = vpop.f32.mrb[0].mxu0
        %v1129 = vpop.f32.mrb[0].mxu0
        %1130 = vdwg.mxu0
        %v1131 = vsel %vm737, %v1126, -inf
        %1132 = vmax.xlane.f32.xlu0 %v1131
        %v1133 = vpop.xlane.xlu0 %1132
        %v1134 = vsub.f32 %v1126, %v1133
        %v1135 = vmul.f32 %v1134, 1.442695
        %v1136 = vpow.pop %v1135
        %v1137 = vsel %vm737, %v1136, 0.0
        %1138 = vadd.xlane.f32.xlu0 %v1137
        %v1139 = vpop.xlane.xlu0 %1138
        %v1140 = vrcp.pop %v1139
        %v1141 = vmul.f32 %v1136, %v1140
        %v1142 = vsel %vm603, 0.0, %v1141
        %v1143 = vpack.c.bf16 %v1142, %v1142
        %1144 = vrot.lane.b32.xlu0 %v736, 40
        %v1145 = vpop.permute.xlu0 %1144
        %v1147 = vsel %vm737, %v1143, 0
        %v1150 = vsel %vm741, %v1145, 0
        %1152 = vmatprep.subr.bf16.mxu0 0
        %1153 = vmatpush1.bf16.msra.mxu0 %v1150
        %1154 = vmatprep.subr.bf16.mxu0 0
        %1155 = vmatpush1.bf16.msra.mxu0 0
        %1156 = vmatprep.subr.bf16.mxu0 0
        %1157 = vmatpush1.bf16.msra.mxu0 0
        %1158 = vmatprep.subr.bf16.mxu0 0
        %1159 = vmatpush1.bf16.msra.mxu0 0
        %1160 = vmatprep.subr.bf16.mxu0 0
        %1161 = vmatpush1.bf16.msra.mxu0 0
        %1162 = vmatprep.subr.bf16.mxu0 0
        %1163 = vmatpush1.bf16.msra.mxu0 0
        %1164 = vmatprep.subr.bf16.mxu0 0
        %1165 = vmatpush1.bf16.msra.mxu0 0
        %1166 = vmatprep.subr.bf16.mxu0 0
        %1167 = vmatpush1.bf16.msra.mxu0 0
        %1168 = vmatprep.subr.bf16.mxu0 0
        %1169 = vmatpush1.bf16.msra.mxu0 0
        %1170 = vmatprep.subr.bf16.mxu0 0
        %1171 = vmatpush1.bf16.msra.mxu0 0
        %1172 = vmatprep.subr.bf16.mxu0 0
        %1173 = vmatpush1.bf16.msra.mxu0 0
        %1174 = vmatprep.subr.bf16.mxu0 0
        %1175 = vmatpush1.bf16.msra.mxu0 0
        %1176 = vmatprep.subr.bf16.mxu0 0
        %1177 = vmatpush1.bf16.msra.mxu0 0
        %1178 = vmatprep.subr.bf16.mxu0 0
        %1179 = vmatpush1.bf16.msra.mxu0 0
        %1180 = vmatprep.subr.bf16.mxu0 0
        %1181 = vmatpush1.bf16.msra.mxu0 0
        %1182 = vmatprep.subr.bf16.mxu0 0
        %1183 = vmatpush1.bf16.msra.mxu0 0
        %1184 = vmatprep.mubr.bf16.mxu0 0
        %1185 = vmatmul.mubr.bf16.gmra.mrb[0].mxu0 %v1147
        %v1186 = vpop.f32.mrb[0].mxu0
        %v1187 = vadd.f32 0.0, %v1186
        %v1188 = vpop.f32.mrb[0].mxu0
        %v1189 = vpop.f32.mrb[0].mxu0
        %v1190 = vpop.f32.mrb[0].mxu0
        %1191 = vdwg.mxu0
        %1193 = vrot.lane.b32.xlu0 %v1187, 24
        %v1194 = vpop.permute.xlu0 %1193
        %vm1196 = vcmask 261312
        %1197 = vst.msk [vmem:[#allocation2] sm:$0xff] %vm1196, %v1194
        %v1198 = vld [vmem:[#allocation2] sm:$0xff]
        %v1199 = vpack.c.bf16 %v1198, %v1198
        %v1200 = vld [vmem:[#allocation9] sm:$0xf]
        %v1201 = vld [vmem:[#allocation9 + $0x4] sm:$0xf]
        %v1202 = vld [vmem:[#allocation9 + $0x8] sm:$0xf]
        %v1203 = vld [vmem:[#allocation9 + $0xc] sm:$0xf]
        %v1208 = vunpack.c.l.b16 %v1200
        %v1209 = vunpack.c.l.b16 %v1201
        %v1210 = vunpack.c.l.b16 %v1202
        %v1211 = vunpack.c.l.b16 %v1203
        %v1212 = vpack.c.b16 %v1209, %v1208
        %v1213 = vpack.c.b16 %v1211, %v1210
        %v1217 = vsel %vm607, %v1199, 0
        %1219 = vmatprep.subr.bf16.mxu0 0
        %1220 = vmatpush1.bf16.msra.mxu0 %v1212
        %1221 = vmatprep.subr.bf16.mxu0 0
        %1222 = vmatpush1.bf16.msra.mxu0 %v1213
        %1223 = vmatprep.subr.bf16.mxu0 0
        %1224 = vmatpush1.bf16.msra.mxu0 0
        %1225 = vmatprep.subr.bf16.mxu0 0
        %1226 = vmatpush1.bf16.msra.mxu0 0
        %1227 = vmatprep.subr.bf16.mxu0 0
        %1228 = vmatpush1.bf16.msra.mxu0 0
        %1229 = vmatprep.subr.bf16.mxu0 0
        %1230 = vmatpush1.bf16.msra.mxu0 0
        %1231 = vmatprep.subr.bf16.mxu0 0
        %1232 = vmatpush1.bf16.msra.mxu0 0
        %1233 = vmatprep.subr.bf16.mxu0 0
        %1234 = vmatpush1.bf16.msra.mxu0 0
        %1235 = vmatprep.subr.bf16.mxu0 0
        %1236 = vmatpush1.bf16.msra.mxu0 0
        %1237 = vmatprep.subr.bf16.mxu0 0
        %1238 = vmatpush1.bf16.msra.mxu0 0
        %1239 = vmatprep.subr.bf16.mxu0 0
        %1240 = vmatpush1.bf16.msra.mxu0 0
        %1241 = vmatprep.subr.bf16.mxu0 0
        %1242 = vmatpush1.bf16.msra.mxu0 0
        %1243 = vmatprep.subr.bf16.mxu0 0
        %1244 = vmatpush1.bf16.msra.mxu0 0
        %1245 = vmatprep.subr.bf16.mxu0 0
        %1246 = vmatpush1.bf16.msra.mxu0 0
        %1247 = vmatprep.subr.bf16.mxu0 0
        %1248 = vmatpush1.bf16.msra.mxu0 0
        %1249 = vmatprep.subr.bf16.mxu0 0
        %1250 = vmatpush1.bf16.msra.mxu0 0
        %1251 = vmatprep.mubr.bf16.mxu0 0
        %1252 = vmatmul.mubr.bf16.gmra.mrb[0].mxu0 %v1217
        %v1253 = vpop.f32.mrb[0].mxu0
        %v1254 = vadd.f32 0.0, %v1253
        %v1255 = vpop.f32.mrb[0].mxu0
        %v1256 = vpop.f32.mrb[0].mxu0
        %v1257 = vpop.f32.mrb[0].mxu0
        %1258 = vdwg.mxu0
        %v1259 = vadd.f32 %v600, %v1254
        %v1260 = vld [vmem:[#allocation20] sm:$0x1]
        %v1261 = vld [vmem:[#allocation21] sm:$0x1]
        %v1262 = vsel %vm607, %v1259, 0.0
        %1263 = vadd.xlane.f32.xlu0 %v1262
        %v1264 = vpop.xlane.xlu0 %1263
        %v1265 = vmul.f32 %v1264, %v611
        %v1266 = vsub.f32 %v1259, %v1265
        %v1267 = vmul.f32 %v1266, %v1266
        %v1268 = vsel %vm607, %v1267, 0.0
        %1269 = vadd.xlane.f32.xlu0 %v1268
        %v1270 = vpop.xlane.xlu0 %1269
        %v1271 = vmul.f32 %v1270, %v611
        %v1272 = vadd.f32 %v1271, 1e-05
        %v1273 = vrsqrt.pop %v1272
        %v1274 = vmul.f32 %v1266, %v1273
        %v1276 = vlaneseq
        %v1277 = vshrl.u32 %v1276, 7
        %v1278 = vsub.s32 0, %v1277
        %v1279 = vrot.slane %v1260, %v1278
        %v1281 = vmul.f32 %v1274, %v1279
        %v1283 = vlaneseq
        %v1284 = vshrl.u32 %v1283, 7
        %v1285 = vsub.s32 0, %v1284
        %v1286 = vrot.slane %v1261, %v1285
        %v1288 = vadd.f32 %v1281, %v1286
        %v1289 = vpack.c.bf16 %v1288, %v1288
        %v1290 = vld [vmem:[#allocation15] sm:$0x1]
        %v1292 = vlaneseq
        %v1293 = vshrl.u32 %v1292, 7
        %v1294 = vsub.s32 0, %v1293
        %v1295 = vrot.slane %v1290, %v1294
        %v1297 = vld [vmem:[#allocation11] sm:$0xf]
        %v1298 = vld [vmem:[#allocation11 + $0x4] sm:$0xf]
        %v1299 = vld [vmem:[#allocation11 + $0x8] sm:$0xf]
        %v1300 = vld [vmem:[#allocation11 + $0xc] sm:$0xf]
        %v1301 = vld [vmem:[#allocation12] sm:$0x1]
        %v1303 = vlaneseq
        %v1304 = vshrl.u32 %v1303, 7
        %v1305 = vsub.s32 0, %v1304
        %v1306 = vrot.slane %v1301, %v1305
        %v1312 = vunpack.c.l.b16 %v1297
        %v1313 = vunpack.c.l.b16 %v1298
        %v1314 = vunpack.c.l.b16 %v1299
        %v1315 = vunpack.c.l.b16 %v1300
        %v1316 = vpack.c.b16 %v1313, %v1312
        %v1317 = vpack.c.b16 %v1315, %v1314
        %v1321 = vsel %vm607, %v1289, 0
        %1323 = vmatprep.subr.bf16.mxu0 0
        %1324 = vmatpush1.bf16.msra.mxu0 %v1316
        %1325 = vmatprep.subr.bf16.mxu0 0
        %1326 = vmatpush1.bf16.msra.mxu0 %v1317
        %1327 = vmatprep.subr.bf16.mxu0 0
        %1328 = vmatpush1.bf16.msra.mxu0 0
        %1329 = vmatprep.subr.bf16.mxu0 0
        %1330 = vmatpush1.bf16.msra.mxu0 0
        %1331 = vmatprep.subr.bf16.mxu0 0
        %1332 = vmatpush1.bf16.msra.mxu0 0
        %1333 = vmatprep.subr.bf16.mxu0 0
        %1334 = vmatpush1.bf16.msra.mxu0 0
        %1335 = vmatprep.subr.bf16.mxu0 0
        %1336 = vmatpush1.bf16.msra.mxu0 0
        %1337 = vmatprep.subr.bf16.mxu0 0
        %1338 = vmatpush1.bf16.msra.mxu0 0
        %1339 = vmatprep.subr.bf16.mxu0 0
        %1340 = vmatpush1.bf16.msra.mxu0 0
        %1341 = vmatprep.subr.bf16.mxu0 0
        %1342 = vmatpush1.bf16.msra.mxu0 0
        %1343 = vmatprep.subr.bf16.mxu0 0
        %1344 = vmatpush1.bf16.msra.mxu0 0
        %1345 = vmatprep.subr.bf16.mxu0 0
        %1346 = vmatpush1.bf16.msra.mxu0 0
        %1347 = vmatprep.subr.bf16.mxu0 0
        %1348 = vmatpush1.bf16.msra.mxu0 0
        %1349 = vmatprep.subr.bf16.mxu0 0
        %1350 = vmatpush1.bf16.msra.mxu0 0
        %1351 = vmatprep.subr.bf16.mxu0 0
        %1352 = vmatpush1.bf16.msra.mxu0 0
        %1353 = vmatprep.subr.bf16.mxu0 0
        %1354 = vmatpush1.bf16.msra.mxu0 0
        %1355 = vmatprep.mubr.bf16.mxu0 0
        %1356 = vmatmul.mubr.bf16.gmra.mrb[0].mxu0 %v1321
        %v1357 = vpop.f32.mrb[0].mxu0
        %v1358 = vadd.f32 %v1306, %v1357
        %v1359 = vpop.f32.mrb[0].mxu0
        %v1360 = vpop.f32.mrb[0].mxu0
        %v1361 = vpop.f32.mrb[0].mxu0
        %1362 = vdwg.mxu0
        %v1363 = vmul.f32 %v1358, 0.5
        %v1364 = vmul.f32 %v1358, %v1358
        %v1365 = vmul.f32 %v1364, %v1358
        %v1366 = vmul.f32 %v1365, 0.044715
        %v1367 = vadd.f32 %v1358, %v1366
        %v1368 = vmul.f32 %v1367, 0.7978846
        %v1369 = vtanh.pop %v1368
        %v1370 = vadd.f32 %v1369, 1.0
        %v1371 = vmul.f32 %v1363, %v1370
        %v1372 = vpack.c.bf16 %v1371, %v1371
        %v1373 = vld [vmem:[#allocation14] sm:$0xf]
        %v1374 = vld [vmem:[#allocation14 + $0x4] sm:$0xf]
        %v1375 = vld [vmem:[#allocation14 + $0x8] sm:$0xf]
        %v1376 = vld [vmem:[#allocation14 + $0xc] sm:$0xf]
        %v1377 = vld [vmem:[#allocation14 + $0x10] sm:$0xf]
        %v1378 = vld [vmem:[#allocation14 + $0x14] sm:$0xf]
        %v1379 = vld [vmem:[#allocation14 + $0x18] sm:$0xf]
        %v1380 = vld [vmem:[#allocation14 + $0x1c] sm:$0xf]
        %v1381 = vld [vmem:[#allocation14 + $0x20] sm:$0xf]
        %v1382 = vld [vmem:[#allocation14 + $0x24] sm:$0xf]
        %v1383 = vld [vmem:[#allocation14 + $0x28] sm:$0xf]
        %v1384 = vld [vmem:[#allocation14 + $0x2c] sm:$0xf]
        %v1385 = vld [vmem:[#allocation14 + $0x30] sm:$0xf]
        %v1386 = vld [vmem:[#allocation14 + $0x34] sm:$0xf]
        %v1387 = vld [vmem:[#allocation14 + $0x38] sm:$0xf]
        %v1388 = vld [vmem:[#allocation14 + $0x3c] sm:$0xf]
        %v1405 = vunpack.c.l.b16 %v1373
        %v1406 = vunpack.c.l.b16 %v1374
        %v1407 = vunpack.c.l.b16 %v1375
        %v1408 = vunpack.c.l.b16 %v1376
        %v1409 = vunpack.c.l.b16 %v1377
        %v1410 = vunpack.c.l.b16 %v1378
        %v1411 = vunpack.c.l.b16 %v1379
        %v1412 = vunpack.c.l.b16 %v1380
        %v1413 = vunpack.c.l.b16 %v1381
        %v1414 = vunpack.c.l.b16 %v1382
        %v1415 = vunpack.c.l.b16 %v1383
        %v1416 = vunpack.c.l.b16 %v1384
        %v1417 = vunpack.c.l.b16 %v1385
        %v1418 = vunpack.c.l.b16 %v1386
        %v1419 = vunpack.c.l.b16 %v1387
        %v1420 = vunpack.c.l.b16 %v1388
        %v1421 = vpack.c.b16 %v1406, %v1405
        %v1422 = vpack.c.b16 %v1408, %v1407
        %v1423 = vpack.c.b16 %v1410, %v1409
        %v1424 = vpack.c.b16 %v1412, %v1411
        %v1425 = vpack.c.b16 %v1414, %v1413
        %v1426 = vpack.c.b16 %v1416, %v1415
        %v1427 = vpack.c.b16 %v1418, %v1417
        %v1428 = vpack.c.b16 %v1420, %v1419
        %1437 = vmatprep.subr.bf16.mxu0 0
        %1438 = vmatpush1.bf16.msra.mxu0 %v1421
        %1439 = vmatprep.subr.bf16.mxu0 0
        %1440 = vmatpush1.bf16.msra.mxu0 %v1422
        %1441 = vmatprep.subr.bf16.mxu0 0
        %1442 = vmatpush1.bf16.msra.mxu0 %v1423
        %1443 = vmatprep.subr.bf16.mxu0 0
        %1444 = vmatpush1.bf16.msra.mxu0 %v1424
        %1445 = vmatprep.subr.bf16.mxu0 0
        %1446 = vmatpush1.bf16.msra.mxu0 %v1425
        %1447 = vmatprep.subr.bf16.mxu0 0
        %1448 = vmatpush1.bf16.msra.mxu0 %v1426
        %1449 = vmatprep.subr.bf16.mxu0 0
        %1450 = vmatpush1.bf16.msra.mxu0 %v1427
        %1451 = vmatprep.subr.bf16.mxu0 0
        %1452 = vmatpush1.bf16.msra.mxu0 %v1428
        %1453 = vmatprep.subr.bf16.mxu0 0
        %1454 = vmatpush1.bf16.msra.mxu0 0
        %1455 = vmatprep.subr.bf16.mxu0 0
        %1456 = vmatpush1.bf16.msra.mxu0 0
        %1457 = vmatprep.subr.bf16.mxu0 0
        %1458 = vmatpush1.bf16.msra.mxu0 0
        %1459 = vmatprep.subr.bf16.mxu0 0
        %1460 = vmatpush1.bf16.msra.mxu0 0
        %1461 = vmatprep.subr.bf16.mxu0 0
        %1462 = vmatpush1.bf16.msra.mxu0 0
        %1463 = vmatprep.subr.bf16.mxu0 0
        %1464 = vmatpush1.bf16.msra.mxu0 0
        %1465 = vmatprep.subr.bf16.mxu0 0
        %1466 = vmatpush1.bf16.msra.mxu0 0
        %1467 = vmatprep.subr.bf16.mxu0 0
        %1468 = vmatpush1.bf16.msra.mxu0 0
        %1469 = vmatprep.mubr.bf16.mxu0 0
        %1470 = vmatmul.mubr.bf16.gmra.mrb[0].mxu0 %v1372
        %v1471 = vpop.f32.mrb[0].mxu0
        %v1472 = vadd.f32 0.0, %v1471
        %v1473 = vpop.f32.mrb[0].mxu0
        %v1474 = vpop.f32.mrb[0].mxu0
        %v1475 = vpop.f32.mrb[0].mxu0
        %1476 = vdwg.mxu0
        %v1477 = vadd.f32 %v1295, %v1472
        %v1478 = vsel %vm737, %v602, 0.0
        %1479 = vadd.xlane.f32.xlu0 %v1478
        %v1480 = vpop.xlane.xlu0 %1479
        %vm1481 = vcmp.gt.f32.partialorder %v1480, 0.0
        %v1482 = vsel %vm1481, 1, 0
        %vm1483 = vcmp.eq.s32.totalorder %v1482, 1
        %v1484 = vsel %vm1483, %v1477, 0.0
        %v1485 = vadd.f32 %v1259, %v1484
        %1486 = vst.msk [vmem:[%s598] sm:$0xff] %vm607, %v1485
        %s1487 = sand.u32 %s307, 1
        %s1488 = scalar_lea.sflag [#allocation5], %s1487
        %s1489 = sand.u32 %s307, 1
        %s1490 = smul.addr %s1489, 8
        %s1491 = scalar_lea.vmem [#allocation23], %s1490
        // Predicated region
        $region117: #{tpu_custom_call.1} parent=67 // pred_check
          %p1492 = pneg %p317
        $region118: #{tpu_custom_call.1} parent=67 // pred_check_branch
          %1494 = sbr.rel (%p1492) target = $region120
        $region119: #{tpu_custom_call.1} parent=67 // pred_region
          %s1496 = ssub.s32 128, 128
          %1497 = vsyncadd %s1488, %s1496
          %s1498 = smul.addr %s37, 128
          %s1499 = scalar_lea.hbm %s12, %s1498
          %s1501 = sshll.u32 %s1491, 4
          %s1502 = int_to_ptr.vmem [resolvable:$true] %s1501
          %1504 = dma.vmem_to_hbm [thread:$0]  %s1502, 128, %s1499, %s1488
        $region120: #{tpu_custom_call.1} parent=67 // pred_fallthru
          _
      $region68: #{tpu_custom_call.1} parent=5 // pred_fallthru
        _
      %p1505 = scmp.le.s32.totalorder 2, %s32
      // Predicated region
      $region121: #{tpu_custom_call.1} parent=5 // pred_check
        %p1506 = pneg %p1505
      $region122: #{tpu_custom_call.1} parent=5 // pred_check_branch
        %1508 = sbr.rel (%p1506) target = $region124
      $region123: #{tpu_custom_call.1} parent=5 // pred_region
        %s1509 = ssub.s32 %s32, 2
        // Predicated region
        $region125: #{tpu_custom_call.1} parent=123 // pred_check
          %p1510 = pneg %p323
        $region126: #{tpu_custom_call.1} parent=123 // pred_check_branch
          %1512 = sbr.rel (%p1510) target = $region128
        $region127: #{tpu_custom_call.1} parent=123 // pred_region
          %s1513 = sand.u32 %s308, 1
          %s1514 = scalar_lea.sflag [#allocation5], %s1513
          %s1515 = sand.u32 %s308, 1
          %s1516 = smul.addr %s1515, 8
          %s1517 = scalar_lea.vmem [#allocation23], %s1516
          %1518 = dma.done %s1514, 128
        $region128: #{tpu_custom_call.1} parent=123 // pred_fallthru
          _
      $region124: #{tpu_custom_call.1} parent=5 // pred_fallthru
        _
    $region6: #{tpu_custom_call.1} parent=1 // loop_footer
      %s36 = sadd.s32 1, %s32
    $region7: #{tpu_custom_call.1} parent=1 // loop_footer_branch
      %31 = sbr.rel target = $region3
    $region8: #{tpu_custom_call.1} parent=1 // loop_exit
      _
    %1519 = vsyncpa [#allocation4], 1
    %s1520 = scalar_lea.sflag [#allocation4], 1
    %1521 = vsyncpa %s1520, 1
    %1522 = vsyncpa [#allocation7], 1
    %s1523 = scalar_lea.sflag [#allocation7], 1
    %1524 = vsyncpa %s1523, 1
    %1525 = vsyncpa [#allocation10], 1
    %1526 = vsyncpa [#allocation13], 1
    %1527 = vsyncpa [#allocation16], 1
    %1528 = vsyncpa [#allocation19], 1
    %1529 = vsyncpa [#allocation22], 1
    %1530 = vsyncpa [#allocation5], 1
    %s1531 = scalar_lea.sflag [#allocation5], 1
    %1532 = vsyncpa %s1531, 1

</llo_original>
